<compile_context>
chip_gen: v7x
topology: tpu7x:2x2x1
jax: 0.10.0
libtpu: 0.0.40
codegen_flags: <defaults>
</compile_context>

<pallas_src>
import jax
import jax.numpy as jnp
from jax.experimental import pallas as pl
from jax.experimental.pallas import tpu as pltpu

NODE_FEATURE_EMBED_DIM = 1
NODE_NUM_DIM = 64           # hidden dim of conv2 / LSTM and one-hot width
HIDDEN1 = 16                # conv1 output dim
LSTM_IN = NODE_NUM_DIM * 3  # 192
MLP_IN = 6 * NODE_NUM_DIM   # 384


# --------------------------------------------------------------------------
# Kernel 1: graph convolutions + pool + LSTM recurrence + linear0 base part
# --------------------------------------------------------------------------
def graph_kernel(
    x0_ref, a_ref, gates_bias_ref, state0_ref,
    conv1_ref, conv2w_ref, bl2_ref, lstm_w_ref, w0chg_ref,
    z0_ref,
    gates_scr,
):
    H = NODE_NUM_DIM
    x0 = x0_ref[...]          # (N, 1)
    a = a_ref[...]            # (N, N) row-normalized in-neighbor adjacency

    # ---- SAGEConv 1:  relu( mean_neigh(x) @ Wl + bl + x @ Wr ) ----
    # K=1 matmuls replaced by VPU broadcast multiplies (perf review item 4).
    agg1 = jnp.dot(a, x0, preferred_element_type=jnp.float32)    # (N, 1)
    wl1 = conv1_ref[0:1, :]   # (1, 16)
    wr1 = conv1_ref[1:2, :]   # (1, 16)
    bl1 = conv1_ref[2:3, :]   # (1, 16)
    h1 = jnp.maximum(agg1 * wl1 + x0 * wr1 + bl1, 0.0)           # (N, 16)

    # ---- SAGEConv 2 ----
    agg2 = jnp.dot(a, h1, preferred_element_type=jnp.float32)    # (N, 16)
    wl2 = conv2w_ref[0:HIDDEN1, :]            # (16, 64)
    wr2 = conv2w_ref[HIDDEN1:2 * HIDDEN1, :]  # (16, 64)
    h2 = jnp.maximum(
        jnp.dot(agg2, wl2, preferred_element_type=jnp.float32)
        + jnp.dot(h1, wr2, preferred_element_type=jnp.float32)
        + bl2_ref[...],
        0.0,
    )                                                            # (N, 64)

    # ---- global mean pool over all nodes ----
    x_g = jnp.mean(h2, axis=0, keepdims=True)                    # (1, 64)

    # ---- LSTM input projection, hoisted out of the recurrence ----
    # one-hot segments of x_cat were pre-gathered host-side into gates_bias,
    # so only the h2 segment needs a matmul here (perf review item 5).
    # Gate order is host-permuted to [i, f, o, g].
    wih_h = lstm_w_ref[0:H, :]       # (64, 256)
    whh = lstm_w_ref[H:2 * H, :]     # (64, 256)
    gates_scr[...] = (
        jnp.dot(h2, wih_h, preferred_element_type=jnp.float32)
        + gates_bias_ref[...]
    )                                                            # (N, 256)

    # ---- sequential LSTMCell over the N nodes (fully unrolled, N static) ----
    hx = state0_ref[0:1, :]          # (1, 64)
    cx = state0_ref[1:2, :]          # (1, 64)
    n_nodes = x0.shape[0]
    # TODO(synk): whh is loop-invariant; explicit pltpu.matmul_push_rhs staging
    # (hold the RHS in the MXU across the 8 steps / v7x MRB in-place
    # accumulation) was not used to keep the lowering portable across
    # v5e/v6e/v7x — the unrolled jnp.dot chain is left to Mosaic.
    for i in range(n_nodes):         # static unroll: zero-cost slices
        gates = gates_scr[i:i + 1, :] + jnp.dot(
            hx, whh, preferred_element_type=jnp.float32)         # (1, 256)
        sig = jax.nn.sigmoid(gates[:, :3 * H])                   # i, f, o
        g_g = jnp.tanh(gates[:, 3 * H:])                         # g
        i_g = sig[:, 0:H]
        f_g = sig[:, H:2 * H]
        o_g = sig[:, 2 * H:3 * H]
        cx = f_g * cx + i_g * g_g
        hx = o_g * jnp.tanh(cx)
        # TODO(synk): tanh(g) and tanh(cx) cannot be fused into one EUP call
        # (v5e suggestion) because tanh(cx) depends on tanh(g) within a step.

    # ---- linear0 pre-activation, shared (cx | hx | x_g) part only ----
    # The routing-table one-hot part and b0 are folded host-side into the
    # per-item rt_bias consumed by the MLP kernel.
    z0_ref[...] = (
        jnp.dot(cx, w0chg_ref[0:H, :], preferred_element_type=jnp.float32)
        + jnp.dot(hx, w0chg_ref[H:2 * H, :], preferred_element_type=jnp.float32)
        + jnp.dot(x_g, w0chg_ref[2 * H:3 * H, :], preferred_element_type=jnp.float32)
    )                                                            # (1, 32)


def run_graph_kernel(x0, a_norm, gates_bias, state0,
                     conv1_p, conv2_w, bl2, lstm_w, w0chg):
    n = x0.shape[0]
    vmem = pl.BlockSpec(memory_space=pltpu.MemorySpace.VMEM)
    return pl.pallas_call(
        graph_kernel,
        out_shape=jax.ShapeDtypeStruct((1, 32), jnp.float32),
        in_specs=[vmem] * 9,
        out_specs=vmem,
        scratch_shapes=[pltpu.VMEM((n, 4 * NODE_NUM_DIM), jnp.float32)],
    )(x0, a_norm, gates_bias, state0, conv1_p, conv2_w, bl2, lstm_w, w0chg)


# --------------------------------------------------------------------------
# Kernel 2: batched MLP over routing-table items (parallel grid axis)
# --------------------------------------------------------------------------
def mlp_kernel(z0_ref, rtb_ref, w_ref, b_ref, out_ref):
    # z0_ref: (1, 32) shared linear0 base; rtb_ref: (TB, 32) per-item bias
    # (one-hot rows of w0 + b0 folded host-side).
    z = jnp.maximum(z0_ref[...] + rtb_ref[...], 0.0)             # (TB, 32)
    w1 = w_ref[0:32, :]    # (32, 16)
    w2 = w_ref[32:48, :]   # (16, 16)  cols 8:16 zero-padded
    w3 = w_ref[48:64, :]   # (16, 16)  only col 0 / rows 0:8 non-zero
    z = jnp.maximum(jnp.dot(z, w1, preferred_element_type=jnp.float32)
                    + b_ref[0:1, :], 0.0)                        # (TB, 16)
    z = jnp.maximum(jnp.dot(z, w2, preferred_element_type=jnp.float32)
                    + b_ref[1:2, :], 0.0)                        # (TB, 16)
    z = jnp.maximum(jnp.dot(z, w3, preferred_element_type=jnp.float32)
                    + b_ref[2:3, :], 0.0)                        # (TB, 16)
    out_ref[...] = z[:, 0:1]                                     # (TB, 1)


def run_mlp_kernel(z0_base, rt_bias, w_pack, b_pack, *, tb=8):
    b_items = rt_bias.shape[0]
    assert b_items % tb == 0
    grid = (b_items // tb,)
    return pl.pallas_call(
        mlp_kernel,
        out_shape=jax.ShapeDtypeStruct((b_items, 1), jnp.float32),
        grid_spec=pltpu.PrefetchScalarGridSpec(
            num_scalar_prefetch=0,
            grid=grid,
            in_specs=[
                pl.BlockSpec((1, 32), lambda i: (0, 0)),
                pl.BlockSpec((tb, 32), lambda i: (i, 0)),
                pl.BlockSpec((64, 16), lambda i: (0, 0)),
                pl.BlockSpec((3, 16), lambda i: (0, 0)),
            ],
            out_specs=pl.BlockSpec((tb, 1), lambda i: (i, 0)),
        ),
        compiler_params=pltpu.CompilerParams(
            dimension_semantics=("parallel",)),
    )(z0_base, rt_bias, w_pack, b_pack)


# --------------------------------------------------------------------------
# Parameters (PyTorch-equivalent layout) and host-side layout transforms
# --------------------------------------------------------------------------
def init_params(key):
    """Deterministic synthetic parameters matching Net.__init__ shapes.

    Weights stored [in, out]; LSTM gate columns in PyTorch's [i, f, g, o]
    order.  All kernel-facing permutation / splitting / folding happens in
    prepare_kernel_params().
    """
    ks = jax.random.split(key, 16)
    f32 = jnp.float32

    def w(k, shape, scale=0.1):
        return (scale * jax.random.normal(k, shape)).astype(f32)

    return {
        # SAGEConv(1, 16): lin_l (with bias) + lin_r (no bias)
        "wl1": w(ks[0], (NODE_FEATURE_EMBED_DIM, HIDDEN1)),
        "wr1": w(ks[1], (NODE_FEATURE_EMBED_DIM, HIDDEN1)),
        "bl1": w(ks[2], (1, HIDDEN1)),
        # SAGEConv(16, 64)
        "wl2": w(ks[3], (HIDDEN1, NODE_NUM_DIM)),
        "wr2": w(ks[4], (HIDDEN1, NODE_NUM_DIM)),
        "bl2": w(ks[5], (1, NODE_NUM_DIM)),
        # LSTMCell(192, 64): gate order [i, f, g, o]
        "wih": w(ks[6], (LSTM_IN, 4 * NODE_NUM_DIM)),
        "whh": w(ks[7], (NODE_NUM_DIM, 4 * NODE_NUM_DIM)),
        "blstm": w(ks[8], (1, 4 * NODE_NUM_DIM)),   # b_ih + b_hh combined
        # MLP
        "w0": w(ks[9], (MLP_IN, 32)), "b0": w(ks[10], (1, 32)),
        "w1": w(ks[11], (32, 16)),    "b1": w(ks[12], (1, 16)),
        "w2": w(ks[13], (16, 8)),     "b2": w(ks[14], (1, 8)),
        "w3": w(ks[15], (8, 1)),      "b3": jnp.zeros((1, 1), jnp.float32),
    }


def prepare_kernel_params(p, src_ids, dst_ids, rt_items, hx0, cx0):
    """Host-side transforms (run inside the same jit as the kernels).

    * Permute LSTM gate columns [i,f,g,o] -> [i,f,o,g].
    * Fold the src/dst one-hot LSTM-input matmuls into a per-node additive
      gates_bias via row gathers (one-hot @ W == W[row]).
    * Fold each routing-table item's one-hot part of linear0 (+ b0) into a
      per-item (B, 32) rt_bias via row gathers of w0.
    * Pack the remaining weights into a handful of larger refs.
    """
    H = NODE_NUM_DIM
    perm = jnp.concatenate([
        jnp.arange(0, 2 * H),        # i, f
        jnp.arange(3 * H, 4 * H),    # o
        jnp.arange(2 * H, 3 * H),    # g
    ])
    wih_p = p["wih"][:, perm]        # (192, 256)
    whh_p = p["whh"][:, perm]        # (64, 256)
    blstm_p = p["blstm"][:, perm]    # (1, 256)

    # per-node additive LSTM gate bias: src one-hot + dst one-hot + biases
    gates_bias = (wih_p[H + src_ids, :]
                  + wih_p[2 * H + dst_ids, :]
                  + blstm_p)                                     # (N, 256)

    # per-item additive linear0 bias: [src | path | dst] one-hot rows + b0
    w0 = p["w0"]
    rt_bias = (w0[3 * H + rt_items[:, 0], :]
               + w0[4 * H + rt_items[:, 1], :]
               + w0[5 * H + rt_items[:, 2], :]
               + p["b0"])                                        # (B, 32)

    # packed MLP weights/biases (w2, w3 zero-padded to 16 output lanes)
    w2_pad = jnp.pad(p["w2"], ((0, 0), (0, 8)))                  # (16, 16)
    w3_pad = jnp.pad(p["w3"], ((0, 8), (0, 15)))                 # (16, 16)
    w_pack = jnp.concatenate([p["w1"], w2_pad, w3_pad], axis=0)  # (64, 16)
    b_pack = jnp.concatenate([
        p["b1"],
        jnp.pad(p["b2"], ((0, 0), (0, 8))),
        jnp.pad(p["b3"], ((0, 0), (0, 15))),
    ], axis=0)                                                   # (3, 16)

    return {
        "gates_bias": gates_bias,
        "state0": jnp.concatenate([hx0, cx0], axis=0),           # (2, 64)
        "conv1_p": jnp.concatenate([p["wl1"], p["wr1"], p["bl1"]], axis=0),
        "conv2_w": jnp.concatenate([p["wl2"], p["wr2"]], axis=0),  # (32, 64)
        "bl2": p["bl2"],
        "lstm_w": jnp.concatenate([wih_p[0:H, :], whh_p], axis=0),  # (128, 256)
        "w0chg": w0[0:3 * H, :],                                 # (192, 32)
        "rt_bias": rt_bias,
        "w_pack": w_pack,
        "b_pack": b_pack,
    }


def net_forward(x0, a_norm, src_ids, dst_ids, rt_items, hx0, cx0, params):
    kp = prepare_kernel_params(params, src_ids, dst_ids, rt_items, hx0, cx0)
    z0_base = run_graph_kernel(
        x0, a_norm, kp["gates_bias"], kp["state0"], kp["conv1_p"],
        kp["conv2_w"], kp["bl2"], kp["lstm_w"], kp["w0chg"])
    return run_mlp_kernel(z0_base, kp["rt_bias"], kp["w_pack"], kp["b_pack"])


# --------------------------------------------------------------------------
# Pure-JAX reference (original PyTorch formulation) to lock in the transforms
# --------------------------------------------------------------------------
def reference_forward(x0, a_norm, src_oh, dst_oh, rt_oh_b, hx0, cx0, p):
    H = NODE_NUM_DIM
    hp = jax.lax.Precision.HIGHEST
    dot = lambda a, b: jnp.dot(a, b, precision=hp)
    h1 = jax.nn.relu(dot(dot(a_norm, x0), p["wl1"]) + p["bl1"]
                     + dot(x0, p["wr1"]))
    h2 = jax.nn.relu(dot(dot(a_norm, h1), p["wl2"]) + p["bl2"]
                     + dot(h1, p["wr2"]))
    x_g = jnp.mean(h2, axis=0, keepdims=True)
    x_cat = jnp.concatenate([h2, src_oh, dst_oh], axis=-1)       # (N, 192)
    hx, cx = hx0, cx0
    for i in range(x0.shape[0]):
        gates = dot(x_cat[i:i + 1], p["wih"]) + p["blstm"] + dot(hx, p["whh"])
        i_g = jax.nn.sigmoid(gates[:, 0:H])
        f_g = jax.nn.sigmoid(gates[:, H:2 * H])
        g_g = jnp.tanh(gates[:, 2 * H:3 * H])
        o_g = jax.nn.sigmoid(gates[:, 3 * H:4 * H])
        cx = f_g * cx + i_g * g_g
        hx = o_g * jnp.tanh(cx)
    b = rt_oh_b.shape[0]
    feat = jnp.concatenate([
        jnp.broadcast_to(cx, (b, H)),
        jnp.broadcast_to(hx, (b, H)),
        jnp.broadcast_to(x_g, (b, H)),
        rt_oh_b,
    ], axis=-1)                                                  # (B, 384)
    z = jax.nn.relu(dot(feat, p["w0"]) + p["b0"])
    z = jax.nn.relu(dot(z, p["w1"]) + p["b1"])
    z = jax.nn.relu(dot(z, p["w2"]) + p["b2"])
    z = jax.nn.relu(dot(z, p["w3"]) + p["b3"])
    return z                                                     # (B, 1)


if __name__ == "__main__":
    key = jax.random.PRNGKey(0)
    (k_feat, k_edge, k_e2n, k_e2ni, k_rt,
     k_hx, k_cx, k_par) = jax.random.split(key, 8)

    # ---- small synthetic graph ----
    N = 8          # number of nodes (node ids < NODE_NUM_DIM = 64)
    E = 16         # number of directed edges
    M = 10         # number of entries in edge_to_node table
    B = 16         # number of routing-table items (batched; grid of 2 blocks)

    node_feat = jax.random.normal(k_feat, (N,)).astype(jnp.float32)
    x0 = node_feat[:, None]                                      # (N, 1)

    edge_index = jax.random.randint(k_edge, (2, E), 0, N)        # (2, E)
    src_nodes, dst_nodes = edge_index[0], edge_index[1]
    # row-normalized adjacency for SAGEConv mean aggregation over in-neighbors
    A = jnp.zeros((N, N), jnp.float32).at[dst_nodes, src_nodes].add(1.0)
    deg = A.sum(axis=1, keepdims=True)
    A_norm = A / jnp.maximum(deg, 1.0)

    # one_hot_encode(): per node, look up its original (src, dst) node ids
    edge_to_node = jax.random.randint(k_e2n, (M, 2), 0, NODE_NUM_DIM)
    edge_to_node_index = jax.random.randint(k_e2ni, (N,), 0, M)
    pairs = edge_to_node[edge_to_node_index]                     # (N, 2)
    src_ids = pairs[:, 0]
    dst_ids = pairs[:, 1]
    src_oh = jax.nn.one_hot(src_ids, NODE_NUM_DIM, dtype=jnp.float32)
    dst_oh = jax.nn.one_hot(dst_ids, NODE_NUM_DIM, dtype=jnp.float32)

    # batch of routing_table_items = [src, path, dst] node ids
    rt_items = jax.random.randint(k_rt, (B, 3), 0, NODE_NUM_DIM)
    rt_oh_b = jax.nn.one_hot(rt_items, NODE_NUM_DIM,
                             dtype=jnp.float32).reshape(B, 3 * NODE_NUM_DIM)

    # TODO(synk): torch.randn hx/cx replaced by a deterministic PRNG draw
    # (shared across the batch), so outputs are not bit-comparable to the
    # PyTorch reference.
    hx0 = jax.random.normal(k_hx, (1, NODE_NUM_DIM)).astype(jnp.float32)
    cx0 = jax.random.normal(k_cx, (1, NODE_NUM_DIM)).astype(jnp.float32)

    params = init_params(k_par)

    fwd = jax.jit(net_forward)
    out = fwd(x0, A_norm, src_ids, dst_ids, rt_items, hx0, cx0, params)
    out = jax.block_until_ready(out)
    assert out.shape == (B, 1) and out.dtype == jnp.float32

    # TODO(synk): `gap` is assumed to be torch_geometric global_mean_pool.
    # pure-JAX reference check locks in the gate permutation / weight splits.
    ref = reference_forward(x0, A_norm, src_oh, dst_oh, rt_oh_b,
                            hx0, cx0, params)
    ref = jax.block_until_ready(ref)
    max_diff = float(jnp.max(jnp.abs(out - ref)))
    assert max_diff < 2e-2, f"kernel vs reference mismatch: {max_diff}"

    print("KERNEL_OK")
</pallas_src>

<mosaic_0001>
module attributes {stable_mosaic.version = 11 : i64} {
  func.func @graph_kernel(%arg0: memref<8x1xf32, #tpu.memory_space<vmem>>, %arg1: memref<8x8xf32, #tpu.memory_space<vmem>>, %arg2: memref<8x256xf32, #tpu.memory_space<vmem>>, %arg3: memref<2x64xf32, #tpu.memory_space<vmem>>, %arg4: memref<3x16xf32, #tpu.memory_space<vmem>>, %arg5: memref<32x64xf32, #tpu.memory_space<vmem>>, %arg6: memref<1x64xf32, #tpu.memory_space<vmem>>, %arg7: memref<128x256xf32, #tpu.memory_space<vmem>>, %arg8: memref<192x32xf32, #tpu.memory_space<vmem>>, %arg9: memref<1x32xf32, #tpu.memory_space<vmem>>, %arg10: memref<8x256xf32, #tpu.memory_space<vmem>>) attributes {dimension_semantics = [], scalar_prefetch = 0 : i64, scratch_operands = 1 : i64, tpu.core_type = #tpu.core_type<tc>} {
    %c0 = arith.constant 0 : index
    %c0_0 = arith.constant 0 : index
    %0 = vector.load %arg0[%c0, %c0_0] : memref<8x1xf32, #tpu.memory_space<vmem>>, vector<8x1xf32>
    %c0_1 = arith.constant 0 : index
    %c0_2 = arith.constant 0 : index
    %1 = vector.load %arg1[%c0_1, %c0_2] : memref<8x8xf32, #tpu.memory_space<vmem>>, vector<8x8xf32>
    %cst = arith.constant dense<0.000000e+00> : vector<8x1xf32>
    %2 = tpu.matmul %1, %0, %cst {dimension_numbers = #tpu.dot_dimension_numbers<[1], [0], [0], [1], [0, 0, 1, 1], [], []>} : vector<8x8xf32>, vector<8x1xf32>, vector<8x1xf32> -> vector<8x1xf32>
    %c0_3 = arith.constant 0 : index
    %c0_4 = arith.constant 0 : index
    %3 = vector.load %arg4[%c0_3, %c0_4] : memref<3x16xf32, #tpu.memory_space<vmem>>, vector<1x16xf32>
    %c1 = arith.constant 1 : index
    %c0_5 = arith.constant 0 : index
    %4 = vector.load %arg4[%c1, %c0_5] : memref<3x16xf32, #tpu.memory_space<vmem>>, vector<1x16xf32>
    %c2 = arith.constant 2 : index
    %c0_6 = arith.constant 0 : index
    %5 = vector.load %arg4[%c2, %c0_6] : memref<3x16xf32, #tpu.memory_space<vmem>>, vector<1x16xf32>
    %6 = vector.broadcast %2 : vector<8x1xf32> to vector<8x16xf32>
    %7 = vector.broadcast %3 : vector<1x16xf32> to vector<8x16xf32>
    %8 = arith.mulf %6, %7 : vector<8x16xf32>
    %9 = vector.broadcast %0 : vector<8x1xf32> to vector<8x16xf32>
    %10 = vector.broadcast %4 : vector<1x16xf32> to vector<8x16xf32>
    %11 = arith.mulf %9, %10 : vector<8x16xf32>
    %12 = arith.addf %8, %11 : vector<8x16xf32>
    %13 = vector.broadcast %5 : vector<1x16xf32> to vector<8x16xf32>
    %14 = arith.addf %12, %13 : vector<8x16xf32>
    %cst_7 = arith.constant 0.000000e+00 : f32
    %15 = vector.broadcast %cst_7 : f32 to vector<8x16xf32>
    %16 = arith.maximumf %14, %15 : vector<8x16xf32>
    %cst_8 = arith.constant dense<0.000000e+00> : vector<8x16xf32>
    %17 = tpu.matmul %1, %16, %cst_8 {dimension_numbers = #tpu.dot_dimension_numbers<[1], [0], [0], [1], [0, 0, 1, 1], [], []>} : vector<8x8xf32>, vector<8x16xf32>, vector<8x16xf32> -> vector<8x16xf32>
    %c0_9 = arith.constant 0 : index
    %c0_10 = arith.constant 0 : index
    %18 = vector.load %arg5[%c0_9, %c0_10] : memref<32x64xf32, #tpu.memory_space<vmem>>, vector<16x64xf32>
    %c16 = arith.constant 16 : index
    %c0_11 = arith.constant 0 : index
    %19 = vector.load %arg5[%c16, %c0_11] : memref<32x64xf32, #tpu.memory_space<vmem>>, vector<16x64xf32>
    %cst_12 = arith.constant dense<0.000000e+00> : vector<8x64xf32>
    %20 = tpu.matmul %17, %18, %cst_12 {dimension_numbers = #tpu.dot_dimension_numbers<[1], [0], [0], [1], [0, 0, 1, 1], [], []>} : vector<8x16xf32>, vector<16x64xf32>, vector<8x64xf32> -> vector<8x64xf32>
    %cst_13 = arith.constant dense<0.000000e+00> : vector<8x64xf32>
    %21 = tpu.matmul %16, %19, %cst_13 {dimension_numbers = #tpu.dot_dimension_numbers<[1], [0], [0], [1], [0, 0, 1, 1], [], []>} : vector<8x16xf32>, vector<16x64xf32>, vector<8x64xf32> -> vector<8x64xf32>
    %22 = arith.addf %20, %21 : vector<8x64xf32>
    %c0_14 = arith.constant 0 : index
    %c0_15 = arith.constant 0 : index
    %23 = vector.load %arg6[%c0_14, %c0_15] : memref<1x64xf32, #tpu.memory_space<vmem>>, vector<1x64xf32>
    %24 = vector.broadcast %23 : vector<1x64xf32> to vector<8x64xf32>
    %25 = arith.addf %22, %24 : vector<8x64xf32>
    %cst_16 = arith.constant 0.000000e+00 : f32
    %26 = vector.broadcast %cst_16 : f32 to vector<8x64xf32>
    %27 = arith.maximumf %25, %26 : vector<8x64xf32>
    %cst_17 = arith.constant dense<0.000000e+00> : vector<64xf32>
    %28 = vector.multi_reduction <add>, %27, %cst_17 [0] : vector<8x64xf32> to vector<64xf32>
    %29 = vector.shape_cast %28 : vector<64xf32> to vector<1x64xf32>
    %cst_18 = arith.constant 8.000000e+00 : f32
    %30 = vector.broadcast %cst_18 : f32 to vector<1x64xf32>
    %31 = arith.divf %29, %30 : vector<1x64xf32>
    %c0_19 = arith.constant 0 : index
    %c0_20 = arith.constant 0 : index
    %32 = vector.load %arg7[%c0_19, %c0_20] : memref<128x256xf32, #tpu.memory_space<vmem>>, vector<64x256xf32>
    %c64 = arith.constant 64 : index
    %c0_21 = arith.constant 0 : index
    %33 = vector.load %arg7[%c64, %c0_21] : memref<128x256xf32, #tpu.memory_space<vmem>>, vector<64x256xf32>
    %cst_22 = arith.constant dense<0.000000e+00> : vector<8x256xf32>
    %34 = tpu.matmul %27, %32, %cst_22 {dimension_numbers = #tpu.dot_dimension_numbers<[1], [0], [0], [1], [0, 0, 1, 1], [], []>} : vector<8x64xf32>, vector<64x256xf32>, vector<8x256xf32> -> vector<8x256xf32>
    %c0_23 = arith.constant 0 : index
    %c0_24 = arith.constant 0 : index
    %35 = vector.load %arg2[%c0_23, %c0_24] : memref<8x256xf32, #tpu.memory_space<vmem>>, vector<8x256xf32>
    %36 = arith.addf %34, %35 : vector<8x256xf32>
    %c0_25 = arith.constant 0 : index
    %c0_26 = arith.constant 0 : index
    %37 = vector.load %arg10[%c0_25, %c0_26] : memref<8x256xf32, #tpu.memory_space<vmem>>, vector<8x256xf32>
    tpu.vector_store %arg10[%c0_25, %c0_26], %36 {strides = array<i32>} : memref<8x256xf32, #tpu.memory_space<vmem>>, vector<8x256xf32>,
    %c0_27 = arith.constant 0 : index
    %c0_28 = arith.constant 0 : index
    %38 = vector.load %arg3[%c0_27, %c0_28] : memref<2x64xf32, #tpu.memory_space<vmem>>, vector<1x64xf32>
    %c1_29 = arith.constant 1 : index
    %c0_30 = arith.constant 0 : index
    %39 = vector.load %arg3[%c1_29, %c0_30] : memref<2x64xf32, #tpu.memory_space<vmem>>, vector<1x64xf32>
    %c0_31 = arith.constant 0 : index
    %c0_32 = arith.constant 0 : index
    %40 = vector.load %arg10[%c0_31, %c0_32] : memref<8x256xf32, #tpu.memory_space<vmem>>, vector<1x256xf32>
    %cst_33 = arith.constant dense<0.000000e+00> : vector<1x256xf32>
    %41 = tpu.matmul %38, %33, %cst_33 {dimension_numbers = #tpu.dot_dimension_numbers<[1], [0], [0], [1], [0, 0, 1, 1], [], []>} : vector<1x64xf32>, vector<64x256xf32>, vector<1x256xf32> -> vector<1x256xf32>
    %42 = arith.addf %40, %41 : vector<1x256xf32>
    %43 = vector.extract_strided_slice %42 {offsets = [0, 0], sizes = [1, 192], strides = [1, 1]} : vector<1x256xf32> to vector<1x192xf32>
    %44 = arith.negf %43 : vector<1x192xf32>
    %45 = math.exp %44 : vector<1x192xf32>
    %cst_34 = arith.constant 1.000000e+00 : f32
    %46 = vector.broadcast %cst_34 : f32 to vector<1x192xf32>
    %47 = arith.addf %46, %45 : vector<1x192xf32>
    %48 = arith.divf %46, %47 : vector<1x192xf32>
    %49 = vector.extract_strided_slice %42 {offsets = [0, 192], sizes = [1, 64], strides = [1, 1]} : vector<1x256xf32> to vector<1x64xf32>
    %50 = math.tanh %49 : vector<1x64xf32>
    %51 = vector.extract_strided_slice %48 {offsets = [0, 0], sizes = [1, 64], strides = [1, 1]} : vector<1x192xf32> to vector<1x64xf32>
    %52 = vector.extract_strided_slice %48 {offsets = [0, 64], sizes = [1, 64], strides = [1, 1]} : vector<1x192xf32> to vector<1x64xf32>
    %53 = vector.extract_strided_slice %48 {offsets = [0, 128], sizes = [1, 64], strides = [1, 1]} : vector<1x192xf32> to vector<1x64xf32>
    %54 = arith.mulf %52, %39 : vector<1x64xf32>
    %55 = arith.mulf %51, %50 : vector<1x64xf32>
    %56 = arith.addf %54, %55 : vector<1x64xf32>
    %57 = math.tanh %56 : vector<1x64xf32>
    %58 = arith.mulf %53, %57 : vector<1x64xf32>
    %c1_35 = arith.constant 1 : index
    %c0_36 = arith.constant 0 : index
    %59 = vector.load %arg10[%c1_35, %c0_36] : memref<8x256xf32, #tpu.memory_space<vmem>>, vector<1x256xf32>
    %cst_37 = arith.constant dense<0.000000e+00> : vector<1x256xf32>
    %60 = tpu.matmul %58, %33, %cst_37 {dimension_numbers = #tpu.dot_dimension_numbers<[1], [0], [0], [1], [0, 0, 1, 1], [], []>} : vector<1x64xf32>, vector<64x256xf32>, vector<1x256xf32> -> vector<1x256xf32>
    %61 = arith.addf %59, %60 : vector<1x256xf32>
    %62 = vector.extract_strided_slice %61 {offsets = [0, 0], sizes = [1, 192], strides = [1, 1]} : vector<1x256xf32> to vector<1x192xf32>
    %63 = arith.negf %62 : vector<1x192xf32>
    %64 = math.exp %63 : vector<1x192xf32>
    %cst_38 = arith.constant 1.000000e+00 : f32
    %65 = vector.broadcast %cst_38 : f32 to vector<1x192xf32>
    %66 = arith.addf %65, %64 : vector<1x192xf32>
    %67 = arith.divf %65, %66 : vector<1x192xf32>
    %68 = vector.extract_strided_slice %61 {offsets = [0, 192], sizes = [1, 64], strides = [1, 1]} : vector<1x256xf32> to vector<1x64xf32>
    %69 = math.tanh %68 : vector<1x64xf32>
    %70 = vector.extract_strided_slice %67 {offsets = [0, 0], sizes = [1, 64], strides = [1, 1]} : vector<1x192xf32> to vector<1x64xf32>
    %71 = vector.extract_strided_slice %67 {offsets = [0, 64], sizes = [1, 64], strides = [1, 1]} : vector<1x192xf32> to vector<1x64xf32>
    %72 = vector.extract_strided_slice %67 {offsets = [0, 128], sizes = [1, 64], strides = [1, 1]} : vector<1x192xf32> to vector<1x64xf32>
    %73 = arith.mulf %71, %56 : vector<1x64xf32>
    %74 = arith.mulf %70, %69 : vector<1x64xf32>
    %75 = arith.addf %73, %74 : vector<1x64xf32>
    %76 = math.tanh %75 : vector<1x64xf32>
    %77 = arith.mulf %72, %76 : vector<1x64xf32>
    %c2_39 = arith.constant 2 : index
    %c0_40 = arith.constant 0 : index
    %78 = vector.load %arg10[%c2_39, %c0_40] : memref<8x256xf32, #tpu.memory_space<vmem>>, vector<1x256xf32>
    %cst_41 = arith.constant dense<0.000000e+00> : vector<1x256xf32>
    %79 = tpu.matmul %77, %33, %cst_41 {dimension_numbers = #tpu.dot_dimension_numbers<[1], [0], [0], [1], [0, 0, 1, 1], [], []>} : vector<1x64xf32>, vector<64x256xf32>, vector<1x256xf32> -> vector<1x256xf32>
    %80 = arith.addf %78, %79 : vector<1x256xf32>
    %81 = vector.extract_strided_slice %80 {offsets = [0, 0], sizes = [1, 192], strides = [1, 1]} : vector<1x256xf32> to vector<1x192xf32>
    %82 = arith.negf %81 : vector<1x192xf32>
    %83 = math.exp %82 : vector<1x192xf32>
    %cst_42 = arith.constant 1.000000e+00 : f32
    %84 = vector.broadcast %cst_42 : f32 to vector<1x192xf32>
    %85 = arith.addf %84, %83 : vector<1x192xf32>
    %86 = arith.divf %84, %85 : vector<1x192xf32>
    %87 = vector.extract_strided_slice %80 {offsets = [0, 192], sizes = [1, 64], strides = [1, 1]} : vector<1x256xf32> to vector<1x64xf32>
    %88 = math.tanh %87 : vector<1x64xf32>
    %89 = vector.extract_strided_slice %86 {offsets = [0, 0], sizes = [1, 64], strides = [1, 1]} : vector<1x192xf32> to vector<1x64xf32>
    %90 = vector.extract_strided_slice %86 {offsets = [0, 64], sizes = [1, 64], strides = [1, 1]} : vector<1x192xf32> to vector<1x64xf32>
    %91 = vector.extract_strided_slice %86 {offsets = [0, 128], sizes = [1, 64], strides = [1, 1]} : vector<1x192xf32> to vector<1x64xf32>
    %92 = arith.mulf %90, %75 : vector<1x64xf32>
    %93 = arith.mulf %89, %88 : vector<1x64xf32>
    %94 = arith.addf %92, %93 : vector<1x64xf32>
    %95 = math.tanh %94 : vector<1x64xf32>
    %96 = arith.mulf %91, %95 : vector<1x64xf32>
    %c3 = arith.constant 3 : index
    %c0_43 = arith.constant 0 : index
    %97 = vector.load %arg10[%c3, %c0_43] : memref<8x256xf32, #tpu.memory_space<vmem>>, vector<1x256xf32>
    %cst_44 = arith.constant dense<0.000000e+00> : vector<1x256xf32>
    %98 = tpu.matmul %96, %33, %cst_44 {dimension_numbers = #tpu.dot_dimension_numbers<[1], [0], [0], [1], [0, 0, 1, 1], [], []>} : vector<1x64xf32>, vector<64x256xf32>, vector<1x256xf32> -> vector<1x256xf32>
    %99 = arith.addf %97, %98 : vector<1x256xf32>
    %100 = vector.extract_strided_slice %99 {offsets = [0, 0], sizes = [1, 192], strides = [1, 1]} : vector<1x256xf32> to vector<1x192xf32>
    %101 = arith.negf %100 : vector<1x192xf32>
    %102 = math.exp %101 : vector<1x192xf32>
    %cst_45 = arith.constant 1.000000e+00 : f32
    %103 = vector.broadcast %cst_45 : f32 to vector<1x192xf32>
    %104 = arith.addf %103, %102 : vector<1x192xf32>
    %105 = arith.divf %103, %104 : vector<1x192xf32>
    %106 = vector.extract_strided_slice %99 {offsets = [0, 192], sizes = [1, 64], strides = [1, 1]} : vector<1x256xf32> to vector<1x64xf32>
    %107 = math.tanh %106 : vector<1x64xf32>
    %108 = vector.extract_strided_slice %105 {offsets = [0, 0], sizes = [1, 64], strides = [1, 1]} : vector<1x192xf32> to vector<1x64xf32>
    %109 = vector.extract_strided_slice %105 {offsets = [0, 64], sizes = [1, 64], strides = [1, 1]} : vector<1x192xf32> to vector<1x64xf32>
    %110 = vector.extract_strided_slice %105 {offsets = [0, 128], sizes = [1, 64], strides = [1, 1]} : vector<1x192xf32> to vector<1x64xf32>
    %111 = arith.mulf %109, %94 : vector<1x64xf32>
    %112 = arith.mulf %108, %107 : vector<1x64xf32>
    %113 = arith.addf %111, %112 : vector<1x64xf32>
    %114 = math.tanh %113 : vector<1x64xf32>
    %115 = arith.mulf %110, %114 : vector<1x64xf32>
    %c4 = arith.constant 4 : index
    %c0_46 = arith.constant 0 : index
    %116 = vector.load %arg10[%c4, %c0_46] : memref<8x256xf32, #tpu.memory_space<vmem>>, vector<1x256xf32>
    %cst_47 = arith.constant dense<0.000000e+00> : vector<1x256xf32>
    %117 = tpu.matmul %115, %33, %cst_47 {dimension_numbers = #tpu.dot_dimension_numbers<[1], [0], [0], [1], [0, 0, 1, 1], [], []>} : vector<1x64xf32>, vector<64x256xf32>, vector<1x256xf32> -> vector<1x256xf32>
    %118 = arith.addf %116, %117 : vector<1x256xf32>
    %119 = vector.extract_strided_slice %118 {offsets = [0, 0], sizes = [1, 192], strides = [1, 1]} : vector<1x256xf32> to vector<1x192xf32>
    %120 = arith.negf %119 : vector<1x192xf32>
    %121 = math.exp %120 : vector<1x192xf32>
    %cst_48 = arith.constant 1.000000e+00 : f32
    %122 = vector.broadcast %cst_48 : f32 to vector<1x192xf32>
    %123 = arith.addf %122, %121 : vector<1x192xf32>
    %124 = arith.divf %122, %123 : vector<1x192xf32>
    %125 = vector.extract_strided_slice %118 {offsets = [0, 192], sizes = [1, 64], strides = [1, 1]} : vector<1x256xf32> to vector<1x64xf32>
    %126 = math.tanh %125 : vector<1x64xf32>
    %127 = vector.extract_strided_slice %124 {offsets = [0, 0], sizes = [1, 64], strides = [1, 1]} : vector<1x192xf32> to vector<1x64xf32>
    %128 = vector.extract_strided_slice %124 {offsets = [0, 64], sizes = [1, 64], strides = [1, 1]} : vector<1x192xf32> to vector<1x64xf32>
    %129 = vector.extract_strided_slice %124 {offsets = [0, 128], sizes = [1, 64], strides = [1, 1]} : vector<1x192xf32> to vector<1x64xf32>
    %130 = arith.mulf %128, %113 : vector<1x64xf32>
    %131 = arith.mulf %127, %126 : vector<1x64xf32>
    %132 = arith.addf %130, %131 : vector<1x64xf32>
    %133 = math.tanh %132 : vector<1x64xf32>
    %134 = arith.mulf %129, %133 : vector<1x64xf32>
    %c5 = arith.constant 5 : index
    %c0_49 = arith.constant 0 : index
    %135 = vector.load %arg10[%c5, %c0_49] : memref<8x256xf32, #tpu.memory_space<vmem>>, vector<1x256xf32>
    %cst_50 = arith.constant dense<0.000000e+00> : vector<1x256xf32>
    %136 = tpu.matmul %134, %33, %cst_50 {dimension_numbers = #tpu.dot_dimension_numbers<[1], [0], [0], [1], [0, 0, 1, 1], [], []>} : vector<1x64xf32>, vector<64x256xf32>, vector<1x256xf32> -> vector<1x256xf32>
    %137 = arith.addf %135, %136 : vector<1x256xf32>
    %138 = vector.extract_strided_slice %137 {offsets = [0, 0], sizes = [1, 192], strides = [1, 1]} : vector<1x256xf32> to vector<1x192xf32>
    %139 = arith.negf %138 : vector<1x192xf32>
    %140 = math.exp %139 : vector<1x192xf32>
    %cst_51 = arith.constant 1.000000e+00 : f32
    %141 = vector.broadcast %cst_51 : f32 to vector<1x192xf32>
    %142 = arith.addf %141, %140 : vector<1x192xf32>
    %143 = arith.divf %141, %142 : vector<1x192xf32>
    %144 = vector.extract_strided_slice %137 {offsets = [0, 192], sizes = [1, 64], strides = [1, 1]} : vector<1x256xf32> to vector<1x64xf32>
    %145 = math.tanh %144 : vector<1x64xf32>
    %146 = vector.extract_strided_slice %143 {offsets = [0, 0], sizes = [1, 64], strides = [1, 1]} : vector<1x192xf32> to vector<1x64xf32>
    %147 = vector.extract_strided_slice %143 {offsets = [0, 64], sizes = [1, 64], strides = [1, 1]} : vector<1x192xf32> to vector<1x64xf32>
    %148 = vector.extract_strided_slice %143 {offsets = [0, 128], sizes = [1, 64], strides = [1, 1]} : vector<1x192xf32> to vector<1x64xf32>
    %149 = arith.mulf %147, %132 : vector<1x64xf32>
    %150 = arith.mulf %146, %145 : vector<1x64xf32>
    %151 = arith.addf %149, %150 : vector<1x64xf32>
    %152 = math.tanh %151 : vector<1x64xf32>
    %153 = arith.mulf %148, %152 : vector<1x64xf32>
    %c6 = arith.constant 6 : index
    %c0_52 = arith.constant 0 : index
    %154 = vector.load %arg10[%c6, %c0_52] : memref<8x256xf32, #tpu.memory_space<vmem>>, vector<1x256xf32>
    %cst_53 = arith.constant dense<0.000000e+00> : vector<1x256xf32>
    %155 = tpu.matmul %153, %33, %cst_53 {dimension_numbers = #tpu.dot_dimension_numbers<[1], [0], [0], [1], [0, 0, 1, 1], [], []>} : vector<1x64xf32>, vector<64x256xf32>, vector<1x256xf32> -> vector<1x256xf32>
    %156 = arith.addf %154, %155 : vector<1x256xf32>
    %157 = vector.extract_strided_slice %156 {offsets = [0, 0], sizes = [1, 192], strides = [1, 1]} : vector<1x256xf32> to vector<1x192xf32>
    %158 = arith.negf %157 : vector<1x192xf32>
    %159 = math.exp %158 : vector<1x192xf32>
    %cst_54 = arith.constant 1.000000e+00 : f32
    %160 = vector.broadcast %cst_54 : f32 to vector<1x192xf32>
    %161 = arith.addf %160, %159 : vector<1x192xf32>
    %162 = arith.divf %160, %161 : vector<1x192xf32>
    %163 = vector.extract_strided_slice %156 {offsets = [0, 192], sizes = [1, 64], strides = [1, 1]} : vector<1x256xf32> to vector<1x64xf32>
    %164 = math.tanh %163 : vector<1x64xf32>
    %165 = vector.extract_strided_slice %162 {offsets = [0, 0], sizes = [1, 64], strides = [1, 1]} : vector<1x192xf32> to vector<1x64xf32>
    %166 = vector.extract_strided_slice %162 {offsets = [0, 64], sizes = [1, 64], strides = [1, 1]} : vector<1x192xf32> to vector<1x64xf32>
    %167 = vector.extract_strided_slice %162 {offsets = [0, 128], sizes = [1, 64], strides = [1, 1]} : vector<1x192xf32> to vector<1x64xf32>
    %168 = arith.mulf %166, %151 : vector<1x64xf32>
    %169 = arith.mulf %165, %164 : vector<1x64xf32>
    %170 = arith.addf %168, %169 : vector<1x64xf32>
    %171 = math.tanh %170 : vector<1x64xf32>
    %172 = arith.mulf %167, %171 : vector<1x64xf32>
    %c7 = arith.constant 7 : index
    %c0_55 = arith.constant 0 : index
    %173 = vector.load %arg10[%c7, %c0_55] : memref<8x256xf32, #tpu.memory_space<vmem>>, vector<1x256xf32>
    %cst_56 = arith.constant dense<0.000000e+00> : vector<1x256xf32>
    %174 = tpu.matmul %172, %33, %cst_56 {dimension_numbers = #tpu.dot_dimension_numbers<[1], [0], [0], [1], [0, 0, 1, 1], [], []>} : vector<1x64xf32>, vector<64x256xf32>, vector<1x256xf32> -> vector<1x256xf32>
    %175 = arith.addf %173, %174 : vector<1x256xf32>
    %176 = vector.extract_strided_slice %175 {offsets = [0, 0], sizes = [1, 192], strides = [1, 1]} : vector<1x256xf32> to vector<1x192xf32>
    %177 = arith.negf %176 : vector<1x192xf32>
    %178 = math.exp %177 : vector<1x192xf32>
    %cst_57 = arith.constant 1.000000e+00 : f32
    %179 = vector.broadcast %cst_57 : f32 to vector<1x192xf32>
    %180 = arith.addf %179, %178 : vector<1x192xf32>
    %181 = arith.divf %179, %180 : vector<1x192xf32>
    %182 = vector.extract_strided_slice %175 {offsets = [0, 192], sizes = [1, 64], strides = [1, 1]} : vector<1x256xf32> to vector<1x64xf32>
    %183 = math.tanh %182 : vector<1x64xf32>
    %184 = vector.extract_strided_slice %181 {offsets = [0, 0], sizes = [1, 64], strides = [1, 1]} : vector<1x192xf32> to vector<1x64xf32>
    %185 = vector.extract_strided_slice %181 {offsets = [0, 64], sizes = [1, 64], strides = [1, 1]} : vector<1x192xf32> to vector<1x64xf32>
    %186 = vector.extract_strided_slice %181 {offsets = [0, 128], sizes = [1, 64], strides = [1, 1]} : vector<1x192xf32> to vector<1x64xf32>
    %187 = arith.mulf %185, %170 : vector<1x64xf32>
    %188 = arith.mulf %184, %183 : vector<1x64xf32>
    %189 = arith.addf %187, %188 : vector<1x64xf32>
    %190 = math.tanh %189 : vector<1x64xf32>
    %191 = arith.mulf %186, %190 : vector<1x64xf32>
    %c0_58 = arith.constant 0 : index
    %c0_59 = arith.constant 0 : index
    %192 = vector.load %arg8[%c0_58, %c0_59] : memref<192x32xf32, #tpu.memory_space<vmem>>, vector<64x32xf32>
    %cst_60 = arith.constant dense<0.000000e+00> : vector<1x32xf32>
    %193 = tpu.matmul %189, %192, %cst_60 {dimension_numbers = #tpu.dot_dimension_numbers<[1], [0], [0], [1], [0, 0, 1, 1], [], []>} : vector<1x64xf32>, vector<64x32xf32>, vector<1x32xf32> -> vector<1x32xf32>
    %c64_61 = arith.constant 64 : index
    %c0_62 = arith.constant 0 : index
    %194 = vector.load %arg8[%c64_61, %c0_62] : memref<192x32xf32, #tpu.memory_space<vmem>>, vector<64x32xf32>
    %cst_63 = arith.constant dense<0.000000e+00> : vector<1x32xf32>
    %195 = tpu.matmul %191, %194, %cst_63 {dimension_numbers = #tpu.dot_dimension_numbers<[1], [0], [0], [1], [0, 0, 1, 1], [], []>} : vector<1x64xf32>, vector<64x32xf32>, vector<1x32xf32> -> vector<1x32xf32>
    %196 = arith.addf %193, %195 : vector<1x32xf32>
    %c128 = arith.constant 128 : index
    %c0_64 = arith.constant 0 : index
    %197 = vector.load %arg8[%c128, %c0_64] : memref<192x32xf32, #tpu.memory_space<vmem>>, vector<64x32xf32>
    %cst_65 = arith.constant dense<0.000000e+00> : vector<1x32xf32>
    %198 = tpu.matmul %31, %197, %cst_65 {dimension_numbers = #tpu.dot_dimension_numbers<[1], [0], [0], [1], [0, 0, 1, 1], [], []>} : vector<1x64xf32>, vector<64x32xf32>, vector<1x32xf32> -> vector<1x32xf32>
    %199 = arith.addf %196, %198 : vector<1x32xf32>
    %c0_66 = arith.constant 0 : index
    %c0_67 = arith.constant 0 : index
    %200 = vector.load %arg9[%c0_66, %c0_67] : memref<1x32xf32, #tpu.memory_space<vmem>>, vector<1x32xf32>
    tpu.vector_store %arg9[%c0_66, %c0_67], %199 {strides = array<i32>} : memref<1x32xf32, #tpu.memory_space<vmem>>, vector<1x32xf32>,
    return
  }
}

module attributes {stable_mosaic.version = 11 : i64} {
  func.func @mlp_kernel(%arg0: i32, %arg1: memref<1x32xf32, #tpu.memory_space<vmem>>, %arg2: memref<8x32xf32, #tpu.memory_space<vmem>>, %arg3: memref<64x16xf32, #tpu.memory_space<vmem>>, %arg4: memref<3x16xf32, #tpu.memory_space<vmem>>, %arg5: memref<8x1xf32, #tpu.memory_space<vmem>>) attributes {dimension_semantics = [#tpu.dimension_semantics<parallel>], iteration_bounds = array<i64: 2>, scalar_prefetch = 0 : i64, scratch_operands = 0 : i64, tpu.core_type = #tpu.core_type<tc>, window_params = [{pipeline_mode = #tpu.pipeline_mode<synchronous>, transform_indices = @transform_0, window_bounds = array<i64: 1, 32>}, {transform_indices = @transform_1, window_bounds = array<i64: 8, 32>}, {pipeline_mode = #tpu.pipeline_mode<synchronous>, transform_indices = @transform_2, window_bounds = array<i64: 64, 16>}, {pipeline_mode = #tpu.pipeline_mode<synchronous>, transform_indices = @transform_3, window_bounds = array<i64: 3, 16>}, {transform_indices = @transform_4, window_bounds = array<i64: 8, 1>}]} {
    %c0 = arith.constant 0 : index
    %c0_0 = arith.constant 0 : index
    %0 = vector.load %arg1[%c0, %c0_0] : memref<1x32xf32, #tpu.memory_space<vmem>>, vector<1x32xf32>
    %c0_1 = arith.constant 0 : index
    %c0_2 = arith.constant 0 : index
    %1 = vector.load %arg2[%c0_1, %c0_2] : memref<8x32xf32, #tpu.memory_space<vmem>>, vector<8x32xf32>
    %2 = vector.broadcast %0 : vector<1x32xf32> to vector<8x32xf32>
    %3 = arith.addf %2, %1 : vector<8x32xf32>
    %cst = arith.constant 0.000000e+00 : f32
    %4 = vector.broadcast %cst : f32 to vector<8x32xf32>
    %5 = arith.maximumf %3, %4 : vector<8x32xf32>
    %c0_3 = arith.constant 0 : index
    %c0_4 = arith.constant 0 : index
    %6 = vector.load %arg3[%c0_3, %c0_4] : memref<64x16xf32, #tpu.memory_space<vmem>>, vector<32x16xf32>
    %c32 = arith.constant 32 : index
    %c0_5 = arith.constant 0 : index
    %7 = vector.load %arg3[%c32, %c0_5] : memref<64x16xf32, #tpu.memory_space<vmem>>, vector<16x16xf32>
    %c48 = arith.constant 48 : index
    %c0_6 = arith.constant 0 : index
    %8 = vector.load %arg3[%c48, %c0_6] : memref<64x16xf32, #tpu.memory_space<vmem>>, vector<16x16xf32>
    %cst_7 = arith.constant dense<0.000000e+00> : vector<8x16xf32>
    %9 = tpu.matmul %5, %6, %cst_7 {dimension_numbers = #tpu.dot_dimension_numbers<[1], [0], [0], [1], [0, 0, 1, 1], [], []>} : vector<8x32xf32>, vector<32x16xf32>, vector<8x16xf32> -> vector<8x16xf32>
    %c0_8 = arith.constant 0 : index
    %c0_9 = arith.constant 0 : index
    %10 = vector.load %arg4[%c0_8, %c0_9] : memref<3x16xf32, #tpu.memory_space<vmem>>, vector<1x16xf32>
    %11 = vector.broadcast %10 : vector<1x16xf32> to vector<8x16xf32>
    %12 = arith.addf %9, %11 : vector<8x16xf32>
    %cst_10 = arith.constant 0.000000e+00 : f32
    %13 = vector.broadcast %cst_10 : f32 to vector<8x16xf32>
    %14 = arith.maximumf %12, %13 : vector<8x16xf32>
    %cst_11 = arith.constant dense<0.000000e+00> : vector<8x16xf32>
    %15 = tpu.matmul %14, %7, %cst_11 {dimension_numbers = #tpu.dot_dimension_numbers<[1], [0], [0], [1], [0, 0, 1, 1], [], []>} : vector<8x16xf32>, vector<16x16xf32>, vector<8x16xf32> -> vector<8x16xf32>
    %c1 = arith.constant 1 : index
    %c0_12 = arith.constant 0 : index
    %16 = vector.load %arg4[%c1, %c0_12] : memref<3x16xf32, #tpu.memory_space<vmem>>, vector<1x16xf32>
    %17 = vector.broadcast %16 : vector<1x16xf32> to vector<8x16xf32>
    %18 = arith.addf %15, %17 : vector<8x16xf32>
    %cst_13 = arith.constant 0.000000e+00 : f32
    %19 = vector.broadcast %cst_13 : f32 to vector<8x16xf32>
    %20 = arith.maximumf %18, %19 : vector<8x16xf32>
    %cst_14 = arith.constant dense<0.000000e+00> : vector<8x16xf32>
    %21 = tpu.matmul %20, %8, %cst_14 {dimension_numbers = #tpu.dot_dimension_numbers<[1], [0], [0], [1], [0, 0, 1, 1], [], []>} : vector<8x16xf32>, vector<16x16xf32>, vector<8x16xf32> -> vector<8x16xf32>
    %c2 = arith.constant 2 : index
    %c0_15 = arith.constant 0 : index
    %22 = vector.load %arg4[%c2, %c0_15] : memref<3x16xf32, #tpu.memory_space<vmem>>, vector<1x16xf32>
    %23 = vector.broadcast %22 : vector<1x16xf32> to vector<8x16xf32>
    %24 = arith.addf %21, %23 : vector<8x16xf32>
    %cst_16 = arith.constant 0.000000e+00 : f32
    %25 = vector.broadcast %cst_16 : f32 to vector<8x16xf32>
    %26 = arith.maximumf %24, %25 : vector<8x16xf32>
    %27 = vector.extract_strided_slice %26 {offsets = [0, 0], sizes = [8, 1], strides = [1, 1]} : vector<8x16xf32> to vector<8x1xf32>
    %c0_17 = arith.constant 0 : index
    %c0_18 = arith.constant 0 : index
    %28 = vector.load %arg5[%c0_17, %c0_18] : memref<8x1xf32, #tpu.memory_space<vmem>>, vector<8x1xf32>
    tpu.vector_store %arg5[%c0_17, %c0_18], %27 {strides = array<i32>} : memref<8x1xf32, #tpu.memory_space<vmem>>, vector<8x1xf32>,
    return
  }
  func.func @transform_0(%arg0: i32) -> (i32, i32) {
    %c0_i32 = arith.constant 0 : i32
    %c0_i32_0 = arith.constant 0 : i32
    %c0_i32_1 = arith.constant 0 : i32
    return %c0_i32, %c0_i32_0 : i32, i32
  }
  func.func @transform_1(%arg0: i32) -> (i32, i32) {
    %c0_i32 = arith.constant 0 : i32
    %c0_i32_0 = arith.constant 0 : i32
    return %arg0, %c0_i32 : i32, i32
  }
  func.func @transform_2(%arg0: i32) -> (i32, i32) {
    %c0_i32 = arith.constant 0 : i32
    %c0_i32_0 = arith.constant 0 : i32
    %c0_i32_1 = arith.constant 0 : i32
    return %c0_i32, %c0_i32_0 : i32, i32
  }
  func.func @transform_3(%arg0: i32) -> (i32, i32) {
    %c0_i32 = arith.constant 0 : i32
    %c0_i32_0 = arith.constant 0 : i32
    %c0_i32_1 = arith.constant 0 : i32
    return %c0_i32, %c0_i32_0 : i32, i32
  }
  func.func @transform_4(%arg0: i32) -> (i32, i32) {
    %c0_i32 = arith.constant 0 : i32
    %c0_i32_0 = arith.constant 0 : i32
    return %arg0, %c0_i32 : i32, i32
  }
}

</mosaic_0001>

<llo_original>
// kernel: net_forward.3
$region0: #{net_forward.3}
  #allocation0 [shape = 'u32[]', space=smem, size = 0x4, offset = 0x4, fixed_abs, tag = 'smem constant byte address 0x4 - core index']
  #allocation1 [shape = 'u32[144,128]{1,0:T(1,128)}', space=vmem, size = 0x12000, scoped, tag = 'internal scratch']
  %s0 = inlined_call_operand.vmem [shape: f32[1,32], index: 0, kind: input, shape index: {}]
  %s1 = inlined_call_operand.vmem [shape: f32[16,32], index: 1, kind: input, shape index: {}]
  %s2 = inlined_call_operand.vmem [shape: f32[64,16], index: 2, kind: input, shape index: {}]
  %s3 = inlined_call_operand.vmem [shape: f32[3,16], index: 3, kind: input, shape index: {}]
  %s4 = inlined_call_operand.vmem [shape: f32[16,1], index: 4, kind: output, shape index: {}]
  %s5 = sld [smem:[#allocation0]]
  $region49: #{net_forward.3} parent=0
    _
  %s7 = ssub.s32 1, %s5
  %s8 = scalar_select 0, %s7, %s5
  loop: start=0, step=1, limit=4
  $region2: #{net_forward.3} parent=0 // loop_pre_header
    _
  $region3: #{net_forward.3} parent=0 // loop_header
    %s10 = sphi 0, %s14
    %p11 = scmp.ge.s32.totalorder %s10, 4
    %s18 = sphi 0, %s18
    %s20 = sphi 0, %s18
    %s21 = sphi 0, %s20
    %s35 = sphi 0, %s21
    %s41 = sphi 0, %s43
    %s44 = sphi 0, %s41
    %s45 = sphi 0, %s44
    %s61 = sphi 0, %s45
    %s65 = sphi 0, %s65
    %s67 = sphi 0, %s65
    %s68 = sphi 0, %s67
    %s82 = sphi 0, %s68
    %s86 = sphi 0, %s86
    %s88 = sphi 0, %s86
    %s89 = sphi 0, %s88
    %s103 = sphi 0, %s89
    %s109 = sphi 0, %s111
    %s112 = sphi 0, %s109
    %s113 = sphi 0, %s112
    %s129 = sphi 0, %s113
  $region4: #{net_forward.3} parent=0 // loop_header_branch
    %13 = sbr.rel (%p11) target = $region8
  $region5: #{net_forward.3} parent=0 // loop_body
    %s15 = ssub.s32 %s10, 1
    %s16 = ssub.s32 %s10, 2
    %s17 = sadd.s32 %s10, 1
    %s19 = sadd.s32 %s18, 1
    %p22 = scmp.eq.s32.totalorder %s10, 1
    %p23 = scmp.ne.s32.totalorder %s18, %s20
    %p24 = scmp.eq.s32.totalorder %s10, 0
    %p25 = por %p23, %p24
    %p26 = scmp.ne.s32.totalorder %s18, %s20
    %p27 = scmp.eq.s32.totalorder %s15, 1
    %p28 = por %p26, %p27
    %p29 = scmp.ne.s32.totalorder %s20, %s21
    %p30 = scmp.eq.s32.totalorder %s15, 0
    %p31 = por %p29, %p30
    %p32 = scmp.ne.s32.totalorder %s20, %s21
    %p33 = scmp.eq.s32.totalorder %s16, 1
    %p34 = por %p32, %p33
    %p36 = scmp.ne.s32.totalorder %s21, %s35
    %p37 = scmp.eq.s32.totalorder %s16, 0
    %p38 = por %p36, %p37
    %s39 = ssub.s32 %s10, %s17
    %p40 = scmp.eq.s32.totalorder %s39, 0
    %s42 = sadd.s32 %s41, 1
    %s43 = scalar_select %p40, %s41, %s42
    %p46 = pneg %p40
    %p47 = scmp.eq.s32.totalorder %s10, 1
    %p48 = por %p46, %p47
    %p49 = scmp.ne.s32.totalorder %s41, %s44
    %p50 = scmp.eq.s32.totalorder %s10, 0
    %p51 = por %p49, %p50
    %p52 = scmp.ne.s32.totalorder %s41, %s44
    %p53 = scmp.eq.s32.totalorder %s15, 1
    %p54 = por %p52, %p53
    %p55 = scmp.ne.s32.totalorder %s44, %s45
    %p56 = scmp.eq.s32.totalorder %s15, 0
    %p57 = por %p55, %p56
    %p58 = scmp.ne.s32.totalorder %s44, %s45
    %p59 = scmp.eq.s32.totalorder %s16, 1
    %p60 = por %p58, %p59
    %p62 = scmp.ne.s32.totalorder %s45, %s61
    %p63 = scmp.eq.s32.totalorder %s16, 0
    %p64 = por %p62, %p63
    %s66 = sadd.s32 %s65, 1
    %p69 = scmp.eq.s32.totalorder %s10, 1
    %p70 = scmp.ne.s32.totalorder %s65, %s67
    %p71 = scmp.eq.s32.totalorder %s10, 0
    %p72 = por %p70, %p71
    %p73 = scmp.ne.s32.totalorder %s65, %s67
    %p74 = scmp.eq.s32.totalorder %s15, 1
    %p75 = por %p73, %p74
    %p76 = scmp.ne.s32.totalorder %s67, %s68
    %p77 = scmp.eq.s32.totalorder %s15, 0
    %p78 = por %p76, %p77
    %p79 = scmp.ne.s32.totalorder %s67, %s68
    %p80 = scmp.eq.s32.totalorder %s16, 1
    %p81 = por %p79, %p80
    %p83 = scmp.ne.s32.totalorder %s68, %s82
    %p84 = scmp.eq.s32.totalorder %s16, 0
    %p85 = por %p83, %p84
    %s87 = sadd.s32 %s86, 1
    %p90 = scmp.eq.s32.totalorder %s10, 1
    %p91 = scmp.ne.s32.totalorder %s86, %s88
    %p92 = scmp.eq.s32.totalorder %s10, 0
    %p93 = por %p91, %p92
    %p94 = scmp.ne.s32.totalorder %s86, %s88
    %p95 = scmp.eq.s32.totalorder %s15, 1
    %p96 = por %p94, %p95
    %p97 = scmp.ne.s32.totalorder %s88, %s89
    %p98 = scmp.eq.s32.totalorder %s15, 0
    %p99 = por %p97, %p98
    %p100 = scmp.ne.s32.totalorder %s88, %s89
    %p101 = scmp.eq.s32.totalorder %s16, 1
    %p102 = por %p100, %p101
    %p104 = scmp.ne.s32.totalorder %s89, %s103
    %p105 = scmp.eq.s32.totalorder %s16, 0
    %p106 = por %p104, %p105
    %s107 = ssub.s32 %s10, %s17
    %p108 = scmp.eq.s32.totalorder %s107, 0
    %s110 = sadd.s32 %s109, 1
    %s111 = scalar_select %p108, %s109, %s110
    %p114 = pneg %p108
    %p115 = scmp.eq.s32.totalorder %s10, 1
    %p116 = por %p114, %p115
    %p117 = scmp.ne.s32.totalorder %s109, %s112
    %p118 = scmp.eq.s32.totalorder %s10, 0
    %p119 = por %p117, %p118
    %p120 = scmp.ne.s32.totalorder %s109, %s112
    %p121 = scmp.eq.s32.totalorder %s15, 1
    %p122 = por %p120, %p121
    %p123 = scmp.ne.s32.totalorder %s112, %s113
    %p124 = scmp.eq.s32.totalorder %s15, 0
    %p125 = por %p123, %p124
    %p126 = scmp.ne.s32.totalorder %s112, %s113
    %p127 = scmp.eq.s32.totalorder %s16, 1
    %p128 = por %p126, %p127
    %p130 = scmp.ne.s32.totalorder %s113, %s129
    %p131 = scmp.eq.s32.totalorder %s16, 0
    %p132 = por %p130, %p131
    %p133 = scmp.le.s32.totalorder 1, %s10
    %p134 = scmp.lt.s32.totalorder %s10, 3
    %p135 = pnand %p133, %p134
    %p136 = pneg %p135
    // Predicated region
    $region9: #{net_forward.3} parent=5 // pred_check
      _
    $region10: #{net_forward.3} parent=5 // pred_check_branch
      %138 = sbr.rel (%p135) target = $region12
    $region11: #{net_forward.3} parent=5 // pred_region
      %s139 = ssub.s32 %s10, 1
      // Predicated region
      $region13: #{net_forward.3} parent=11 // pred_check
        %p140 = pneg %p31
      $region14: #{net_forward.3} parent=11 // pred_check_branch
        %142 = sbr.rel (%p140) target = $region16
      $region15: #{net_forward.3} parent=11 // pred_region
        _
      $region16: #{net_forward.3} parent=11 // pred_fallthru
        _
      // Predicated region
      $region17: #{net_forward.3} parent=11 // pred_check
        %p143 = pneg %p78
      $region18: #{net_forward.3} parent=11 // pred_check_branch
        %145 = sbr.rel (%p143) target = $region20
      $region19: #{net_forward.3} parent=11 // pred_region
        _
      $region20: #{net_forward.3} parent=11 // pred_fallthru
        _
      // Predicated region
      $region21: #{net_forward.3} parent=11 // pred_check
        %p146 = pneg %p99
      $region22: #{net_forward.3} parent=11 // pred_check_branch
        %148 = sbr.rel (%p146) target = $region24
      $region23: #{net_forward.3} parent=11 // pred_region
        _
      $region24: #{net_forward.3} parent=11 // pred_fallthru
        _
    $region12: #{net_forward.3} parent=5 // pred_fallthru
      _
    %p149 = scmp.lt.s32.totalorder %s10, 2
    // Predicated region
    $region25: #{net_forward.3} parent=5 // pred_check
      %p150 = pneg %p149
    $region26: #{net_forward.3} parent=5 // pred_check_branch
      %152 = sbr.rel (%p150) target = $region28
    $region27: #{net_forward.3} parent=5 // pred_region
      // Predicated region
      $region29: #{net_forward.3} parent=27 // pred_check
        %p153 = pneg %p51
      $region30: #{net_forward.3} parent=27 // pred_check_branch
        %155 = sbr.rel (%p153) target = $region32
      $region31: #{net_forward.3} parent=27 // pred_region
        %p156 = scmp.lt.s32.totalorder %s10, 1
        %s157 = scalar_select %p156, %s10, 1
        %s158 = smul.addr %s157, 8
        %s159 = scalar_lea.vmem %s1, %s158
      $region32: #{net_forward.3} parent=27 // pred_fallthru
        _
    $region28: #{net_forward.3} parent=5 // pred_fallthru
      _
    %p160 = scmp.le.s32.totalorder 1, %s10
    %p161 = scmp.lt.s32.totalorder %s10, 3
    %p162 = pnand %p160, %p161
    %p163 = pneg %p162
    // Predicated region
    $region33: #{net_forward.3} parent=5 // pred_check
      _
    $region34: #{net_forward.3} parent=5 // pred_check_branch
      %165 = sbr.rel (%p162) target = $region36
    $region35: #{net_forward.3} parent=5 // pred_region
      %s166 = ssub.s32 %s10, 1
      %p167 = pneg %p31
      %p168 = pneg %p28
      %p169 = scmp.lt.s32.totalorder %s15, 1
      %s170 = scalar_select %p169, %s15, 1
      %s171 = smul.addr %s170, 8
      %s172 = scalar_lea.vmem %s1, %s171
      %p173 = pneg %p57
      %p174 = pneg %p54
      %p175 = pneg %p78
      %p176 = pneg %p75
      %p177 = pneg %p99
      %p178 = pneg %p96
      %p179 = pneg %p125
      %p180 = pneg %p122
      %p181 = scmp.lt.s32.totalorder %s15, 1
      %s182 = scalar_select %p181, %s15, 1
      %s183 = smul.addr %s182, 8
      %s184 = scalar_lea.vmem %s4, %s183
      %p185 = scmp.lt.s32.totalorder %s15, 1
      %s186 = scalar_select %p185, %s15, 1
      %s187 = smul.addr %s186, 8
      %s188 = scalar_lea.vmem %s1, %s187
      %p189 = scmp.lt.s32.totalorder %s15, 1
      %s190 = scalar_select %p189, %s15, 1
      %s191 = smul.addr %s190, 8
      %s192 = scalar_lea.vmem %s4, %s191
      %v193 = vld [vmem:[%s0] sm:$0x1]
      %v194 = vld [vmem:[%s188] sm:$0xff]
      %v196 = vlaneseq
      %v197 = vshrl.u32 %v196, 7
      %v198 = vsub.s32 0, %v197
      %v199 = vrot.slane %v193, %v198
      %v201 = vadd.f32 %v199, %v194
      %v202 = vmax.f32 %v201, 0.0
      %v203 = vld [vmem:[%s2] sm:$0xff]
      %v204 = vld [vmem:[%s2 + $0x8] sm:$0xff]
      %v205 = vld [vmem:[%s2 + $0x10] sm:$0xff]
      %v206 = vld [vmem:[%s2 + $0x18] sm:$0xff]
      %v207 = vld [vmem:[%s2 + $0x20] sm:$0xff]
      %v208 = vld [vmem:[%s2 + $0x28] sm:$0xff]
      %v209 = vld [vmem:[%s2 + $0x30] sm:$0xff]
      %v210 = vld [vmem:[%s2 + $0x38] sm:$0xff]
      %v211 = vld [vmem:[%s3] sm:$0x1]
      %v212 = vlaneseq
      %v213 = vshrl.u32 %v212, 7
      %v214 = vsub.s32 0, %v213
      %v215 = vrot.slane %v211, %v214
      %vm216 = vcmask 261120
      %v218 = vsel %vm216, %v202, 0
      %220 = vmatprep.subr.mxu0 0.0
      %221 = vmatpush1.msra.mxu0 %v203
      %222 = vmatprep.subr.mxu0 0.0
      %223 = vmatpush1.msra.mxu0 %v204
      %224 = vmatprep.subr.mxu0 0.0
      %225 = vmatpush1.msra.mxu0 %v205
      %226 = vmatprep.subr.mxu0 0.0
      %227 = vmatpush1.msra.mxu0 %v206
      %228 = vmatprep.subr.mxu0 0.0
      %229 = vmatpush1.msra.mxu0 0.0
      %230 = vmatprep.subr.mxu0 0.0
      %231 = vmatpush1.msra.mxu0 0.0
      %232 = vmatprep.subr.mxu0 0.0
      %233 = vmatpush1.msra.mxu0 0.0
      %234 = vmatprep.subr.mxu0 0.0
      %235 = vmatpush1.msra.mxu0 0.0
      %236 = vmatprep.subr.mxu0 0.0
      %237 = vmatpush1.msra.mxu0 0.0
      %238 = vmatprep.subr.mxu0 0.0
      %239 = vmatpush1.msra.mxu0 0.0
      %240 = vmatprep.subr.mxu0 0.0
      %241 = vmatpush1.msra.mxu0 0.0
      %242 = vmatprep.subr.mxu0 0.0
      %243 = vmatpush1.msra.mxu0 0.0
      %244 = vmatprep.subr.mxu0 0.0
      %245 = vmatpush1.msra.mxu0 0.0
      %246 = vmatprep.subr.mxu0 0.0
      %247 = vmatpush1.msra.mxu0 0.0
      %248 = vmatprep.subr.mxu0 0.0
      %249 = vmatpush1.msra.mxu0 0.0
      %250 = vmatprep.subr.mxu0 0.0
      %251 = vmatpush1.msra.mxu0 0.0
      %252 = vmatprep.subr.mxu0 0.0
      %253 = vmatpush1.msra.mxu0 0.0
      %254 = vmatprep.subr.mxu0 0.0
      %255 = vmatpush1.msra.mxu0 0.0
      %256 = vmatprep.subr.mxu0 0.0
      %257 = vmatpush1.msra.mxu0 0.0
      %258 = vmatprep.subr.mxu0 0.0
      %259 = vmatpush1.msra.mxu0 0.0
      %260 = vmatprep.subr.mxu0 0.0
      %261 = vmatpush1.msra.mxu0 0.0
      %262 = vmatprep.subr.mxu0 0.0
      %263 = vmatpush1.msra.mxu0 0.0
      %264 = vmatprep.subr.mxu0 0.0
      %265 = vmatpush1.msra.mxu0 0.0
      %266 = vmatprep.subr.mxu0 0.0
      %267 = vmatpush1.msra.mxu0 0.0
      %268 = vmatprep.subr.mxu0 0.0
      %269 = vmatpush1.msra.mxu0 0.0
      %270 = vmatprep.subr.mxu0 0.0
      %271 = vmatpush1.msra.mxu0 0.0
      %272 = vmatprep.subr.mxu0 0.0
      %273 = vmatpush1.msra.mxu0 0.0
      %274 = vmatprep.subr.mxu0 0.0
      %275 = vmatpush1.msra.mxu0 0.0
      %276 = vmatprep.subr.mxu0 0.0
      %277 = vmatpush1.msra.mxu0 0.0
      %278 = vmatprep.subr.mxu0 0.0
      %279 = vmatpush1.msra.mxu0 0.0
      %280 = vmatprep.subr.mxu0 0.0
      %281 = vmatpush1.msra.mxu0 0.0
      %282 = vmatprep.subr.mxu0 0.0
      %283 = vmatpush1.msra.mxu0 0.0
      %284 = vmatprep.mubr.f32.mxu0 0.0
      %285 = vmatmul.mubr.f32.gmra.mrb[0].mxu0 %v218
      %v286 = vpop.f32.mrb[0].mxu0
      %v287 = vadd.f32 %v215, %v286
      %v288 = vpop.f32.mrb[0].mxu0
      %289 = vdwg.mxu0
      %v290 = vmax.f32 %v287, 0.0
      %v291 = vld [vmem:[%s3 + $0x1] sm:$0x1]
      %v292 = vlaneseq
      %v293 = vshrl.u32 %v292, 7
      %v294 = vsub.s32 0, %v293
      %v295 = vrot.slane %v291, %v294
      %vm296 = vcmask 130048
      %v298 = vsel %vm296, %v290, 0
      %300 = vmatprep.subr.mxu0 0.0
      %301 = vmatpush1.msra.mxu0 %v207
      %302 = vmatprep.subr.mxu0 0.0
      %303 = vmatpush1.msra.mxu0 %v208
      %304 = vmatprep.subr.mxu0 0.0
      %305 = vmatpush1.msra.mxu0 0.0
      %306 = vmatprep.subr.mxu0 0.0
      %307 = vmatpush1.msra.mxu0 0.0
      %308 = vmatprep.subr.mxu0 0.0
      %309 = vmatpush1.msra.mxu0 0.0
      %310 = vmatprep.subr.mxu0 0.0
      %311 = vmatpush1.msra.mxu0 0.0
      %312 = vmatprep.subr.mxu0 0.0
      %313 = vmatpush1.msra.mxu0 0.0
      %314 = vmatprep.subr.mxu0 0.0
      %315 = vmatpush1.msra.mxu0 0.0
      %316 = vmatprep.subr.mxu0 0.0
      %317 = vmatpush1.msra.mxu0 0.0
      %318 = vmatprep.subr.mxu0 0.0
      %319 = vmatpush1.msra.mxu0 0.0
      %320 = vmatprep.subr.mxu0 0.0
      %321 = vmatpush1.msra.mxu0 0.0
      %322 = vmatprep.subr.mxu0 0.0
      %323 = vmatpush1.msra.mxu0 0.0
      %324 = vmatprep.subr.mxu0 0.0
      %325 = vmatpush1.msra.mxu0 0.0
      %326 = vmatprep.subr.mxu0 0.0
      %327 = vmatpush1.msra.mxu0 0.0
      %328 = vmatprep.subr.mxu0 0.0
      %329 = vmatpush1.msra.mxu0 0.0
      %330 = vmatprep.subr.mxu0 0.0
      %331 = vmatpush1.msra.mxu0 0.0
      %332 = vmatprep.subr.mxu0 0.0
      %333 = vmatpush1.msra.mxu0 0.0
      %334 = vmatprep.subr.mxu0 0.0
      %335 = vmatpush1.msra.mxu0 0.0
      %336 = vmatprep.subr.mxu0 0.0
      %337 = vmatpush1.msra.mxu0 0.0
      %338 = vmatprep.subr.mxu0 0.0
      %339 = vmatpush1.msra.mxu0 0.0
      %340 = vmatprep.subr.mxu0 0.0
      %341 = vmatpush1.msra.mxu0 0.0
      %342 = vmatprep.subr.mxu0 0.0
      %343 = vmatpush1.msra.mxu0 0.0
      %344 = vmatprep.subr.mxu0 0.0
      %345 = vmatpush1.msra.mxu0 0.0
      %346 = vmatprep.subr.mxu0 0.0
      %347 = vmatpush1.msra.mxu0 0.0
      %348 = vmatprep.subr.mxu0 0.0
      %349 = vmatpush1.msra.mxu0 0.0
      %350 = vmatprep.subr.mxu0 0.0
      %351 = vmatpush1.msra.mxu0 0.0
      %352 = vmatprep.subr.mxu0 0.0
      %353 = vmatpush1.msra.mxu0 0.0
      %354 = vmatprep.subr.mxu0 0.0
      %355 = vmatpush1.msra.mxu0 0.0
      %356 = vmatprep.subr.mxu0 0.0
      %357 = vmatpush1.msra.mxu0 0.0
      %358 = vmatprep.subr.mxu0 0.0
      %359 = vmatpush1.msra.mxu0 0.0
      %360 = vmatprep.subr.mxu0 0.0
      %361 = vmatpush1.msra.mxu0 0.0
      %362 = vmatprep.subr.mxu0 0.0
      %363 = vmatpush1.msra.mxu0 0.0
      %364 = vmatprep.mubr.f32.mxu0 0.0
      %365 = vmatmul.mubr.f32.gmra.mrb[0].mxu0 %v298
      %v366 = vpop.f32.mrb[0].mxu0
      %v367 = vadd.f32 %v295, %v366
      %v368 = vpop.f32.mrb[0].mxu0
      %369 = vdwg.mxu0
      %v370 = vmax.f32 %v367, 0.0
      %v371 = vld [vmem:[%s3 + $0x2] sm:$0x1]
      %v372 = vlaneseq
      %v373 = vshrl.u32 %v372, 7
      %v374 = vsub.s32 0, %v373
      %v375 = vrot.slane %v371, %v374
      %v377 = vsel %vm296, %v370, 0
      %379 = vmatprep.subr.mxu0 0.0
      %380 = vmatpush1.msra.mxu0 %v209
      %381 = vmatprep.subr.mxu0 0.0
      %382 = vmatpush1.msra.mxu0 %v210
      %383 = vmatprep.subr.mxu0 0.0
      %384 = vmatpush1.msra.mxu0 0.0
      %385 = vmatprep.subr.mxu0 0.0
      %386 = vmatpush1.msra.mxu0 0.0
      %387 = vmatprep.subr.mxu0 0.0
      %388 = vmatpush1.msra.mxu0 0.0
      %389 = vmatprep.subr.mxu0 0.0
      %390 = vmatpush1.msra.mxu0 0.0
      %391 = vmatprep.subr.mxu0 0.0
      %392 = vmatpush1.msra.mxu0 0.0
      %393 = vmatprep.subr.mxu0 0.0
      %394 = vmatpush1.msra.mxu0 0.0
      %395 = vmatprep.subr.mxu0 0.0
      %396 = vmatpush1.msra.mxu0 0.0
      %397 = vmatprep.subr.mxu0 0.0
      %398 = vmatpush1.msra.mxu0 0.0
      %399 = vmatprep.subr.mxu0 0.0
      %400 = vmatpush1.msra.mxu0 0.0
      %401 = vmatprep.subr.mxu0 0.0
      %402 = vmatpush1.msra.mxu0 0.0
      %403 = vmatprep.subr.mxu0 0.0
      %404 = vmatpush1.msra.mxu0 0.0
      %405 = vmatprep.subr.mxu0 0.0
      %406 = vmatpush1.msra.mxu0 0.0
      %407 = vmatprep.subr.mxu0 0.0
      %408 = vmatpush1.msra.mxu0 0.0
      %409 = vmatprep.subr.mxu0 0.0
      %410 = vmatpush1.msra.mxu0 0.0
      %411 = vmatprep.subr.mxu0 0.0
      %412 = vmatpush1.msra.mxu0 0.0
      %413 = vmatprep.subr.mxu0 0.0
      %414 = vmatpush1.msra.mxu0 0.0
      %415 = vmatprep.subr.mxu0 0.0
      %416 = vmatpush1.msra.mxu0 0.0
      %417 = vmatprep.subr.mxu0 0.0
      %418 = vmatpush1.msra.mxu0 0.0
      %419 = vmatprep.subr.mxu0 0.0
      %420 = vmatpush1.msra.mxu0 0.0
      %421 = vmatprep.subr.mxu0 0.0
      %422 = vmatpush1.msra.mxu0 0.0
      %423 = vmatprep.subr.mxu0 0.0
      %424 = vmatpush1.msra.mxu0 0.0
      %425 = vmatprep.subr.mxu0 0.0
      %426 = vmatpush1.msra.mxu0 0.0
      %427 = vmatprep.subr.mxu0 0.0
      %428 = vmatpush1.msra.mxu0 0.0
      %429 = vmatprep.subr.mxu0 0.0
      %430 = vmatpush1.msra.mxu0 0.0
      %431 = vmatprep.subr.mxu0 0.0
      %432 = vmatpush1.msra.mxu0 0.0
      %433 = vmatprep.subr.mxu0 0.0
      %434 = vmatpush1.msra.mxu0 0.0
      %435 = vmatprep.subr.mxu0 0.0
      %436 = vmatpush1.msra.mxu0 0.0
      %437 = vmatprep.subr.mxu0 0.0
      %438 = vmatpush1.msra.mxu0 0.0
      %439 = vmatprep.subr.mxu0 0.0
      %440 = vmatpush1.msra.mxu0 0.0
      %441 = vmatprep.subr.mxu0 0.0
      %442 = vmatpush1.msra.mxu0 0.0
      %443 = vmatprep.mubr.f32.mxu0 0.0
      %444 = vmatmul.mubr.f32.gmra.mrb[0].mxu0 %v377
      %v445 = vpop.f32.mrb[0].mxu0
      %v446 = vadd.f32 %v375, %v445
      %v447 = vpop.f32.mrb[0].mxu0
      %448 = vdwg.mxu0
      %v449 = vmax.f32 %v446, 0.0
      %vm450 = vcmask 7168
      %451 = vst.msk [vmem:[%s192] sm:$0xff] %vm450, %v449
      %p452 = scmp.lt.s32.totalorder %s15, 1
      %s453 = scalar_select %p452, %s15, 1
      %s454 = smul.addr %s453, 8
      %s455 = scalar_lea.vmem %s4, %s454
      // Predicated region
      $region37: #{net_forward.3} parent=35 // pred_check
        %p456 = pneg %p122
      $region38: #{net_forward.3} parent=35 // pred_check_branch
        %458 = sbr.rel (%p456) target = $region40
      $region39: #{net_forward.3} parent=35 // pred_region
        _
      $region40: #{net_forward.3} parent=35 // pred_fallthru
        _
    $region36: #{net_forward.3} parent=5 // pred_fallthru
      _
    %p459 = scmp.le.s32.totalorder 2, %s10
    // Predicated region
    $region41: #{net_forward.3} parent=5 // pred_check
      %p460 = pneg %p459
    $region42: #{net_forward.3} parent=5 // pred_check_branch
      %462 = sbr.rel (%p460) target = $region44
    $region43: #{net_forward.3} parent=5 // pred_region
      %s463 = ssub.s32 %s10, 2
      // Predicated region
      $region45: #{net_forward.3} parent=43 // pred_check
        %p464 = pneg %p128
      $region46: #{net_forward.3} parent=43 // pred_check_branch
        %466 = sbr.rel (%p464) target = $region48
      $region47: #{net_forward.3} parent=43 // pred_region
        %p467 = scmp.lt.s32.totalorder %s16, 1
        %s468 = scalar_select %p467, %s16, 1
        %s469 = smul.addr %s468, 8
        %s470 = scalar_lea.vmem %s4, %s469
      $region48: #{net_forward.3} parent=43 // pred_fallthru
        _
    $region44: #{net_forward.3} parent=5 // pred_fallthru
      _
  $region6: #{net_forward.3} parent=0 // loop_footer
    %s14 = sadd.s32 1, %s10
  $region7: #{net_forward.3} parent=0 // loop_footer_branch
    %9 = sbr.rel target = $region3
  $region8: #{net_forward.3} parent=0 // loop_exit
    _

// kernel: net_forward.2
$region0: #{net_forward.2}
  #allocation0 [shape = 'u32[]', space=smem, size = 0x4, offset = 0x4, fixed_abs, tag = 'smem constant byte address 0x4 - core index']
  #allocation1 [shape = 'u32[144,128]{1,0:T(1,128)}', space=vmem, size = 0x12000, scoped, tag = 'internal scratch']
  #allocation2 [shape = 'f32[8,256]{1,0:T(8,128)}', space=vmem, size = 0x2000, scoped, tag = 'scratch operand']
  %s0 = inlined_call_operand.vmem [shape: f32[8,1], index: 0, kind: input, shape index: {}]
  %s1 = inlined_call_operand.vmem [shape: f32[8,8], index: 1, kind: input, shape index: {}]
  %s2 = inlined_call_operand.vmem [shape: f32[8,256], index: 2, kind: input, shape index: {}]
  %s3 = inlined_call_operand.vmem [shape: f32[2,64], index: 3, kind: input, shape index: {}]
  %s4 = inlined_call_operand.vmem [shape: f32[3,16], index: 4, kind: input, shape index: {}]
  %s5 = inlined_call_operand.vmem [shape: f32[32,64], index: 5, kind: input, shape index: {}]
  %s6 = inlined_call_operand.vmem [shape: f32[1,64], index: 6, kind: input, shape index: {}]
  %s7 = inlined_call_operand.vmem [shape: f32[128,256], index: 7, kind: input, shape index: {}]
  %s8 = inlined_call_operand.vmem [shape: f32[192,32], index: 8, kind: input, shape index: {}]
  %s9 = inlined_call_operand.vmem [shape: f32[1,32], index: 9, kind: output, shape index: {}]
  %s10 = sld [smem:[#allocation0]]
  $region46: #{net_forward.2} parent=0
    _
  %s12 = ssub.s32 1, %s10
  %s13 = scalar_select 0, %s12, %s10
  // Predicated region
  $region2: #{net_forward.2} parent=0 // pred_check
    _
  $region3: #{net_forward.2} parent=0 // pred_check_branch
    %15 = sbr.rel (0) target = $region5
  $region4: #{net_forward.2} parent=0 // pred_region
    _
  $region5: #{net_forward.2} parent=0 // pred_fallthru
    _
  // Predicated region
  $region6: #{net_forward.2} parent=0 // pred_check
    _
  $region7: #{net_forward.2} parent=0 // pred_check_branch
    %17 = sbr.rel (0) target = $region9
  $region8: #{net_forward.2} parent=0 // pred_region
    _
  $region9: #{net_forward.2} parent=0 // pred_fallthru
    _
  // Predicated region
  $region10: #{net_forward.2} parent=0 // pred_check
    _
  $region11: #{net_forward.2} parent=0 // pred_check_branch
    %19 = sbr.rel (0) target = $region13
  $region12: #{net_forward.2} parent=0 // pred_region
    _
  $region13: #{net_forward.2} parent=0 // pred_fallthru
    _
  // Predicated region
  $region14: #{net_forward.2} parent=0 // pred_check
    _
  $region15: #{net_forward.2} parent=0 // pred_check_branch
    %21 = sbr.rel (0) target = $region17
  $region16: #{net_forward.2} parent=0 // pred_region
    _
  $region17: #{net_forward.2} parent=0 // pred_fallthru
    _
  // Predicated region
  $region18: #{net_forward.2} parent=0 // pred_check
    _
  $region19: #{net_forward.2} parent=0 // pred_check_branch
    %23 = sbr.rel (0) target = $region21
  $region20: #{net_forward.2} parent=0 // pred_region
    _
  $region21: #{net_forward.2} parent=0 // pred_fallthru
    _
  // Predicated region
  $region22: #{net_forward.2} parent=0 // pred_check
    _
  $region23: #{net_forward.2} parent=0 // pred_check_branch
    %25 = sbr.rel (0) target = $region25
  $region24: #{net_forward.2} parent=0 // pred_region
    _
  $region25: #{net_forward.2} parent=0 // pred_fallthru
    _
  // Predicated region
  $region26: #{net_forward.2} parent=0 // pred_check
    _
  $region27: #{net_forward.2} parent=0 // pred_check_branch
    %27 = sbr.rel (0) target = $region29
  $region28: #{net_forward.2} parent=0 // pred_region
    _
  $region29: #{net_forward.2} parent=0 // pred_fallthru
    _
  // Predicated region
  $region30: #{net_forward.2} parent=0 // pred_check
    _
  $region31: #{net_forward.2} parent=0 // pred_check_branch
    %29 = sbr.rel (0) target = $region33
  $region32: #{net_forward.2} parent=0 // pred_region
    _
  $region33: #{net_forward.2} parent=0 // pred_fallthru
    _
  // Predicated region
  $region34: #{net_forward.2} parent=0 // pred_check
    _
  $region35: #{net_forward.2} parent=0 // pred_check_branch
    %31 = sbr.rel (0) target = $region37
  $region36: #{net_forward.2} parent=0 // pred_region
    _
  $region37: #{net_forward.2} parent=0 // pred_fallthru
    _
  %v32 = vld [vmem:[%s0] sm:$0xff]
  %v33 = vld [vmem:[%s1] sm:$0xff]
  %vm34 = vcmask 64512
  %v36 = vsel %vm34, %v33, 0
  %38 = vmatprep.subr.mxu0 0.0
  %39 = vmatpush1.msra.mxu0 %v32
  %40 = vmatprep.subr.mxu0 0.0
  %41 = vmatpush1.msra.mxu0 0.0
  %42 = vmatprep.subr.mxu0 0.0
  %43 = vmatpush1.msra.mxu0 0.0
  %44 = vmatprep.subr.mxu0 0.0
  %45 = vmatpush1.msra.mxu0 0.0
  %46 = vmatprep.subr.mxu0 0.0
  %47 = vmatpush1.msra.mxu0 0.0
  %48 = vmatprep.subr.mxu0 0.0
  %49 = vmatpush1.msra.mxu0 0.0
  %50 = vmatprep.subr.mxu0 0.0
  %51 = vmatpush1.msra.mxu0 0.0
  %52 = vmatprep.subr.mxu0 0.0
  %53 = vmatpush1.msra.mxu0 0.0
  %54 = vmatprep.subr.mxu0 0.0
  %55 = vmatpush1.msra.mxu0 0.0
  %56 = vmatprep.subr.mxu0 0.0
  %57 = vmatpush1.msra.mxu0 0.0
  %58 = vmatprep.subr.mxu0 0.0
  %59 = vmatpush1.msra.mxu0 0.0
  %60 = vmatprep.subr.mxu0 0.0
  %61 = vmatpush1.msra.mxu0 0.0
  %62 = vmatprep.subr.mxu0 0.0
  %63 = vmatpush1.msra.mxu0 0.0
  %64 = vmatprep.subr.mxu0 0.0
  %65 = vmatpush1.msra.mxu0 0.0
  %66 = vmatprep.subr.mxu0 0.0
  %67 = vmatpush1.msra.mxu0 0.0
  %68 = vmatprep.subr.mxu0 0.0
  %69 = vmatpush1.msra.mxu0 0.0
  %70 = vmatprep.subr.mxu0 0.0
  %71 = vmatpush1.msra.mxu0 0.0
  %72 = vmatprep.subr.mxu0 0.0
  %73 = vmatpush1.msra.mxu0 0.0
  %74 = vmatprep.subr.mxu0 0.0
  %75 = vmatpush1.msra.mxu0 0.0
  %76 = vmatprep.subr.mxu0 0.0
  %77 = vmatpush1.msra.mxu0 0.0
  %78 = vmatprep.subr.mxu0 0.0
  %79 = vmatpush1.msra.mxu0 0.0
  %80 = vmatprep.subr.mxu0 0.0
  %81 = vmatpush1.msra.mxu0 0.0
  %82 = vmatprep.subr.mxu0 0.0
  %83 = vmatpush1.msra.mxu0 0.0
  %84 = vmatprep.subr.mxu0 0.0
  %85 = vmatpush1.msra.mxu0 0.0
  %86 = vmatprep.subr.mxu0 0.0
  %87 = vmatpush1.msra.mxu0 0.0
  %88 = vmatprep.subr.mxu0 0.0
  %89 = vmatpush1.msra.mxu0 0.0
  %90 = vmatprep.subr.mxu0 0.0
  %91 = vmatpush1.msra.mxu0 0.0
  %92 = vmatprep.subr.mxu0 0.0
  %93 = vmatpush1.msra.mxu0 0.0
  %94 = vmatprep.subr.mxu0 0.0
  %95 = vmatpush1.msra.mxu0 0.0
  %96 = vmatprep.subr.mxu0 0.0
  %97 = vmatpush1.msra.mxu0 0.0
  %98 = vmatprep.subr.mxu0 0.0
  %99 = vmatpush1.msra.mxu0 0.0
  %100 = vmatprep.subr.mxu0 0.0
  %101 = vmatpush1.msra.mxu0 0.0
  %102 = vmatprep.mubr.f32.mxu0 0.0
  %103 = vmatmul.mubr.f32.gmra.mrb[0].mxu0 %v36
  %v104 = vpop.f32.mrb[0].mxu0
  %v105 = vadd.f32 0.0, %v104
  %v106 = vpop.f32.mrb[0].mxu0
  %107 = vdwg.mxu0
  %v108 = vld [vmem:[%s4] sm:$0x1]
  %v109 = vld [vmem:[%s4 + $0x1] sm:$0x1]
  %v110 = vld [vmem:[%s4 + $0x2] sm:$0x1]
  %112 = vset.pattern.permute.xlu0 0
  %113 = vperm.xlu0 %112, %v105
  %v114 = vpop.permute.xlu0 %113
  %v116 = vlaneseq
  %v117 = vshrl.u32 %v116, 7
  %v118 = vsub.s32 0, %v117
  %v119 = vrot.slane %v108, %v118
  %v120 = vmul.f32 %v114, %v119
  %122 = vset.pattern.permute.xlu0 0
  %123 = vperm.xlu0 %122, %v32
  %v124 = vpop.permute.xlu0 %123
  %v126 = vlaneseq
  %v127 = vshrl.u32 %v126, 7
  %v128 = vsub.s32 0, %v127
  %v129 = vrot.slane %v109, %v128
  %v130 = vmul.f32 %v124, %v129
  %v131 = vadd.f32 %v120, %v130
  %v132 = vlaneseq
  %v133 = vshrl.u32 %v132, 7
  %v134 = vsub.s32 0, %v133
  %v135 = vrot.slane %v110, %v134
  %v136 = vadd.f32 %v131, %v135
  %v137 = vmax.f32 %v136, 0.0
  %138 = vmatprep.subr.mxu0 0.0
  %139 = vmatpush1.msra.mxu0 %v137
  %140 = vmatprep.subr.mxu0 0.0
  %141 = vmatpush1.msra.mxu0 0.0
  %142 = vmatprep.subr.mxu0 0.0
  %143 = vmatpush1.msra.mxu0 0.0
  %144 = vmatprep.subr.mxu0 0.0
  %145 = vmatpush1.msra.mxu0 0.0
  %146 = vmatprep.subr.mxu0 0.0
  %147 = vmatpush1.msra.mxu0 0.0
  %148 = vmatprep.subr.mxu0 0.0
  %149 = vmatpush1.msra.mxu0 0.0
  %150 = vmatprep.subr.mxu0 0.0
  %151 = vmatpush1.msra.mxu0 0.0
  %152 = vmatprep.subr.mxu0 0.0
  %153 = vmatpush1.msra.mxu0 0.0
  %154 = vmatprep.subr.mxu0 0.0
  %155 = vmatpush1.msra.mxu0 0.0
  %156 = vmatprep.subr.mxu0 0.0
  %157 = vmatpush1.msra.mxu0 0.0
  %158 = vmatprep.subr.mxu0 0.0
  %159 = vmatpush1.msra.mxu0 0.0
  %160 = vmatprep.subr.mxu0 0.0
  %161 = vmatpush1.msra.mxu0 0.0
  %162 = vmatprep.subr.mxu0 0.0
  %163 = vmatpush1.msra.mxu0 0.0
  %164 = vmatprep.subr.mxu0 0.0
  %165 = vmatpush1.msra.mxu0 0.0
  %166 = vmatprep.subr.mxu0 0.0
  %167 = vmatpush1.msra.mxu0 0.0
  %168 = vmatprep.subr.mxu0 0.0
  %169 = vmatpush1.msra.mxu0 0.0
  %170 = vmatprep.subr.mxu0 0.0
  %171 = vmatpush1.msra.mxu0 0.0
  %172 = vmatprep.subr.mxu0 0.0
  %173 = vmatpush1.msra.mxu0 0.0
  %174 = vmatprep.subr.mxu0 0.0
  %175 = vmatpush1.msra.mxu0 0.0
  %176 = vmatprep.subr.mxu0 0.0
  %177 = vmatpush1.msra.mxu0 0.0
  %178 = vmatprep.subr.mxu0 0.0
  %179 = vmatpush1.msra.mxu0 0.0
  %180 = vmatprep.subr.mxu0 0.0
  %181 = vmatpush1.msra.mxu0 0.0
  %182 = vmatprep.subr.mxu0 0.0
  %183 = vmatpush1.msra.mxu0 0.0
  %184 = vmatprep.subr.mxu0 0.0
  %185 = vmatpush1.msra.mxu0 0.0
  %186 = vmatprep.subr.mxu0 0.0
  %187 = vmatpush1.msra.mxu0 0.0
  %188 = vmatprep.subr.mxu0 0.0
  %189 = vmatpush1.msra.mxu0 0.0
  %190 = vmatprep.subr.mxu0 0.0
  %191 = vmatpush1.msra.mxu0 0.0
  %192 = vmatprep.subr.mxu0 0.0
  %193 = vmatpush1.msra.mxu0 0.0
  %194 = vmatprep.subr.mxu0 0.0
  %195 = vmatpush1.msra.mxu0 0.0
  %196 = vmatprep.subr.mxu0 0.0
  %197 = vmatpush1.msra.mxu0 0.0
  %198 = vmatprep.subr.mxu0 0.0
  %199 = vmatpush1.msra.mxu0 0.0
  %200 = vmatprep.subr.mxu0 0.0
  %201 = vmatpush1.msra.mxu0 0.0
  %202 = vmatprep.mubr.f32.mxu0 0.0
  %203 = vmatmul.mubr.f32.gmra.mrb[0].mxu0 %v36
  %v204 = vpop.f32.mrb[0].mxu0
  %v205 = vadd.f32 0.0, %v204
  %v206 = vpop.f32.mrb[0].mxu0
  %207 = vdwg.mxu0
  %v208 = vld [vmem:[%s5] sm:$0xff]
  %v209 = vld [vmem:[%s5 + $0x8] sm:$0xff]
  %v210 = vld [vmem:[%s5 + $0x10] sm:$0xff]
  %v211 = vld [vmem:[%s5 + $0x18] sm:$0xff]
  %vm212 = vcmask 130048
  %v214 = vsel %vm212, %v137, 0
  %216 = vmatprep.subr.mxu0 0.0
  %217 = vmatpush1.msra.mxu0 %v210
  %218 = vmatprep.subr.mxu0 0.0
  %219 = vmatpush1.msra.mxu0 %v211
  %220 = vmatprep.subr.mxu0 0.0
  %221 = vmatpush1.msra.mxu0 0.0
  %222 = vmatprep.subr.mxu0 0.0
  %223 = vmatpush1.msra.mxu0 0.0
  %224 = vmatprep.subr.mxu0 0.0
  %225 = vmatpush1.msra.mxu0 0.0
  %226 = vmatprep.subr.mxu0 0.0
  %227 = vmatpush1.msra.mxu0 0.0
  %228 = vmatprep.subr.mxu0 0.0
  %229 = vmatpush1.msra.mxu0 0.0
  %230 = vmatprep.subr.mxu0 0.0
  %231 = vmatpush1.msra.mxu0 0.0
  %232 = vmatprep.subr.mxu0 0.0
  %233 = vmatpush1.msra.mxu0 0.0
  %234 = vmatprep.subr.mxu0 0.0
  %235 = vmatpush1.msra.mxu0 0.0
  %236 = vmatprep.subr.mxu0 0.0
  %237 = vmatpush1.msra.mxu0 0.0
  %238 = vmatprep.subr.mxu0 0.0
  %239 = vmatpush1.msra.mxu0 0.0
  %240 = vmatprep.subr.mxu0 0.0
  %241 = vmatpush1.msra.mxu0 0.0
  %242 = vmatprep.subr.mxu0 0.0
  %243 = vmatpush1.msra.mxu0 0.0
  %244 = vmatprep.subr.mxu0 0.0
  %245 = vmatpush1.msra.mxu0 0.0
  %246 = vmatprep.subr.mxu0 0.0
  %247 = vmatpush1.msra.mxu0 0.0
  %248 = vmatprep.subr.mxu0 0.0
  %249 = vmatpush1.msra.mxu0 0.0
  %250 = vmatprep.subr.mxu0 0.0
  %251 = vmatpush1.msra.mxu0 0.0
  %252 = vmatprep.subr.mxu0 0.0
  %253 = vmatpush1.msra.mxu0 0.0
  %254 = vmatprep.subr.mxu0 0.0
  %255 = vmatpush1.msra.mxu0 0.0
  %256 = vmatprep.subr.mxu0 0.0
  %257 = vmatpush1.msra.mxu0 0.0
  %258 = vmatprep.subr.mxu0 0.0
  %259 = vmatpush1.msra.mxu0 0.0
  %260 = vmatprep.subr.mxu0 0.0
  %261 = vmatpush1.msra.mxu0 0.0
  %262 = vmatprep.subr.mxu0 0.0
  %263 = vmatpush1.msra.mxu0 0.0
  %264 = vmatprep.subr.mxu0 0.0
  %265 = vmatpush1.msra.mxu0 0.0
  %266 = vmatprep.subr.mxu0 0.0
  %267 = vmatpush1.msra.mxu0 0.0
  %268 = vmatprep.subr.mxu0 0.0
  %269 = vmatpush1.msra.mxu0 0.0
  %270 = vmatprep.subr.mxu0 0.0
  %271 = vmatpush1.msra.mxu0 0.0
  %272 = vmatprep.subr.mxu0 0.0
  %273 = vmatpush1.msra.mxu0 0.0
  %274 = vmatprep.subr.mxu0 0.0
  %275 = vmatpush1.msra.mxu0 0.0
  %276 = vmatprep.subr.mxu0 0.0
  %277 = vmatpush1.msra.mxu0 0.0
  %278 = vmatprep.subr.mxu0 0.0
  %279 = vmatpush1.msra.mxu0 0.0
  %280 = vmatprep.mubr.f32.mxu0 0.0
  %281 = vmatmul.mubr.f32.gmra.mrb[0].mxu0 %v214
  %v282 = vpop.f32.mrb[0].mxu0
  %v283 = vadd.f32 0.0, %v282
  %v284 = vpop.f32.mrb[0].mxu0
  %285 = vdwg.mxu0
  %v287 = vsel %vm212, %v205, 0
  %289 = vmatprep.subr.mxu0 0.0
  %290 = vmatpush1.msra.mxu0 %v208
  %291 = vmatprep.subr.mxu0 0.0
  %292 = vmatpush1.msra.mxu0 %v209
  %293 = vmatprep.subr.mxu0 0.0
  %294 = vmatpush1.msra.mxu0 0.0
  %295 = vmatprep.subr.mxu0 0.0
  %296 = vmatpush1.msra.mxu0 0.0
  %297 = vmatprep.subr.mxu0 0.0
  %298 = vmatpush1.msra.mxu0 0.0
  %299 = vmatprep.subr.mxu0 0.0
  %300 = vmatpush1.msra.mxu0 0.0
  %301 = vmatprep.subr.mxu0 0.0
  %302 = vmatpush1.msra.mxu0 0.0
  %303 = vmatprep.subr.mxu0 0.0
  %304 = vmatpush1.msra.mxu0 0.0
  %305 = vmatprep.subr.mxu0 0.0
  %306 = vmatpush1.msra.mxu0 0.0
  %307 = vmatprep.subr.mxu0 0.0
  %308 = vmatpush1.msra.mxu0 0.0
  %309 = vmatprep.subr.mxu0 0.0
  %310 = vmatpush1.msra.mxu0 0.0
  %311 = vmatprep.subr.mxu0 0.0
  %312 = vmatpush1.msra.mxu0 0.0
  %313 = vmatprep.subr.mxu0 0.0
  %314 = vmatpush1.msra.mxu0 0.0
  %315 = vmatprep.subr.mxu0 0.0
  %316 = vmatpush1.msra.mxu0 0.0
  %317 = vmatprep.subr.mxu0 0.0
  %318 = vmatpush1.msra.mxu0 0.0
  %319 = vmatprep.subr.mxu0 0.0
  %320 = vmatpush1.msra.mxu0 0.0
  %321 = vmatprep.subr.mxu0 0.0
  %322 = vmatpush1.msra.mxu0 0.0
  %323 = vmatprep.subr.mxu0 0.0
  %324 = vmatpush1.msra.mxu0 0.0
  %325 = vmatprep.subr.mxu0 0.0
  %326 = vmatpush1.msra.mxu0 0.0
  %327 = vmatprep.subr.mxu0 0.0
  %328 = vmatpush1.msra.mxu0 0.0
  %329 = vmatprep.subr.mxu0 0.0
  %330 = vmatpush1.msra.mxu0 0.0
  %331 = vmatprep.subr.mxu0 0.0
  %332 = vmatpush1.msra.mxu0 0.0
  %333 = vmatprep.subr.mxu0 0.0
  %334 = vmatpush1.msra.mxu0 0.0
  %335 = vmatprep.subr.mxu0 0.0
  %336 = vmatpush1.msra.mxu0 0.0
  %337 = vmatprep.subr.mxu0 0.0
  %338 = vmatpush1.msra.mxu0 0.0
  %339 = vmatprep.subr.mxu0 0.0
  %340 = vmatpush1.msra.mxu0 0.0
  %341 = vmatprep.subr.mxu0 0.0
  %342 = vmatpush1.msra.mxu0 0.0
  %343 = vmatprep.subr.mxu0 0.0
  %344 = vmatpush1.msra.mxu0 0.0
  %345 = vmatprep.subr.mxu0 0.0
  %346 = vmatpush1.msra.mxu0 0.0
  %347 = vmatprep.subr.mxu0 0.0
  %348 = vmatpush1.msra.mxu0 0.0
  %349 = vmatprep.subr.mxu0 0.0
  %350 = vmatpush1.msra.mxu0 0.0
  %351 = vmatprep.subr.mxu0 0.0
  %352 = vmatpush1.msra.mxu0 0.0
  %353 = vmatprep.mubr.f32.mxu0 0.0
  %354 = vmatmul.mubr.f32.gmra.mrb[0].mxu0 %v287
  %v355 = vpop.f32.mrb[0].mxu0
  %v356 = vadd.f32 %v283, %v355
  %v357 = vpop.f32.mrb[0].mxu0
  %358 = vdwg.mxu0
  %v359 = vld [vmem:[%s6] sm:$0x1]
  %v361 = vlaneseq
  %v362 = vshrl.u32 %v361, 7
  %v363 = vsub.s32 0, %v362
  %v364 = vrot.slane %v359, %v363
  %v366 = vadd.f32 %v356, %v364
  %v367 = vmax.f32 %v366, 0.0
  %vm368 = vcmask 523264
  %v369 = vsel %vm368, %v367, 0.0
  %v370 = vrot.slane %v369, 4
  %v371 = vadd.f32 %v369, %v370
  %v372 = vrot.slane %v371, 2
  %v373 = vadd.f32 %v371, %v372
  %v374 = vrot.slane %v373, 1
  %v375 = vadd.f32 %v373, %v374
  %v376 = vrcp.pop 8.0
  %v377 = vmul.f32 %v375, %v376
  %v378 = vld [vmem:[%s7] sm:$0xff]
  %v379 = vld [vmem:[%s7 + $0x8] sm:$0xff]
  %v380 = vld [vmem:[%s7 + $0x10] sm:$0xff]
  %v381 = vld [vmem:[%s7 + $0x18] sm:$0xff]
  %v382 = vld [vmem:[%s7 + $0x20] sm:$0xff]
  %v383 = vld [vmem:[%s7 + $0x28] sm:$0xff]
  %v384 = vld [vmem:[%s7 + $0x30] sm:$0xff]
  %v385 = vld [vmem:[%s7 + $0x38] sm:$0xff]
  %v386 = vld [vmem:[%s7 + $0x40] sm:$0xff]
  %v387 = vld [vmem:[%s7 + $0x48] sm:$0xff]
  %v388 = vld [vmem:[%s7 + $0x50] sm:$0xff]
  %v389 = vld [vmem:[%s7 + $0x58] sm:$0xff]
  %v390 = vld [vmem:[%s7 + $0x60] sm:$0xff]
  %v391 = vld [vmem:[%s7 + $0x68] sm:$0xff]
  %v392 = vld [vmem:[%s7 + $0x70] sm:$0xff]
  %v393 = vld [vmem:[%s7 + $0x78] sm:$0xff]
  %v394 = vld [vmem:[%s7 + $0x80] sm:$0xff]
  %v395 = vld [vmem:[%s7 + $0x88] sm:$0xff]
  %v396 = vld [vmem:[%s7 + $0x90] sm:$0xff]
  %v397 = vld [vmem:[%s7 + $0x98] sm:$0xff]
  %v398 = vld [vmem:[%s7 + $0xa0] sm:$0xff]
  %v399 = vld [vmem:[%s7 + $0xa8] sm:$0xff]
  %v400 = vld [vmem:[%s7 + $0xb0] sm:$0xff]
  %v401 = vld [vmem:[%s7 + $0xb8] sm:$0xff]
  %v402 = vld [vmem:[%s7 + $0xc0] sm:$0xff]
  %v403 = vld [vmem:[%s7 + $0xc8] sm:$0xff]
  %v404 = vld [vmem:[%s7 + $0xd0] sm:$0xff]
  %v405 = vld [vmem:[%s7 + $0xd8] sm:$0xff]
  %v406 = vld [vmem:[%s7 + $0xe0] sm:$0xff]
  %v407 = vld [vmem:[%s7 + $0xe8] sm:$0xff]
  %v408 = vld [vmem:[%s7 + $0xf0] sm:$0xff]
  %v409 = vld [vmem:[%s7 + $0xf8] sm:$0xff]
  %v410 = vld [vmem:[%s2] sm:$0xff]
  %v411 = vld [vmem:[%s2 + $0x8] sm:$0xff]
  %v413 = vsel %vm368, %v367, 0
  %415 = vmatprep.subr.mxu0 %v379
  %416 = vmatpush1.msra.mxu0 %v378
  %417 = vmatprep.subr.mxu0 %v381
  %418 = vmatpush1.msra.mxu0 %v380
  %419 = vmatprep.subr.mxu0 %v383
  %420 = vmatpush1.msra.mxu0 %v382
  %421 = vmatprep.subr.mxu0 %v385
  %422 = vmatpush1.msra.mxu0 %v384
  %423 = vmatprep.subr.mxu0 %v387
  %424 = vmatpush1.msra.mxu0 %v386
  %425 = vmatprep.subr.mxu0 %v389
  %426 = vmatpush1.msra.mxu0 %v388
  %427 = vmatprep.subr.mxu0 %v391
  %428 = vmatpush1.msra.mxu0 %v390
  %429 = vmatprep.subr.mxu0 %v393
  %430 = vmatpush1.msra.mxu0 %v392
  %431 = vmatprep.subr.mxu0 0.0
  %432 = vmatpush1.msra.mxu0 0.0
  %433 = vmatprep.subr.mxu0 0.0
  %434 = vmatpush1.msra.mxu0 0.0
  %435 = vmatprep.subr.mxu0 0.0
  %436 = vmatpush1.msra.mxu0 0.0
  %437 = vmatprep.subr.mxu0 0.0
  %438 = vmatpush1.msra.mxu0 0.0
  %439 = vmatprep.subr.mxu0 0.0
  %440 = vmatpush1.msra.mxu0 0.0
  %441 = vmatprep.subr.mxu0 0.0
  %442 = vmatpush1.msra.mxu0 0.0
  %443 = vmatprep.subr.mxu0 0.0
  %444 = vmatpush1.msra.mxu0 0.0
  %445 = vmatprep.subr.mxu0 0.0
  %446 = vmatpush1.msra.mxu0 0.0
  %447 = vmatprep.subr.mxu0 0.0
  %448 = vmatpush1.msra.mxu0 0.0
  %449 = vmatprep.subr.mxu0 0.0
  %450 = vmatpush1.msra.mxu0 0.0
  %451 = vmatprep.subr.mxu0 0.0
  %452 = vmatpush1.msra.mxu0 0.0
  %453 = vmatprep.subr.mxu0 0.0
  %454 = vmatpush1.msra.mxu0 0.0
  %455 = vmatprep.subr.mxu0 0.0
  %456 = vmatpush1.msra.mxu0 0.0
  %457 = vmatprep.subr.mxu0 0.0
  %458 = vmatpush1.msra.mxu0 0.0
  %459 = vmatprep.subr.mxu0 0.0
  %460 = vmatpush1.msra.mxu0 0.0
  %461 = vmatprep.subr.mxu0 0.0
  %462 = vmatpush1.msra.mxu0 0.0
  %463 = vmatprep.subr.mxu0 0.0
  %464 = vmatpush1.msra.mxu0 0.0
  %465 = vmatprep.subr.mxu0 0.0
  %466 = vmatpush1.msra.mxu0 0.0
  %467 = vmatprep.subr.mxu0 0.0
  %468 = vmatpush1.msra.mxu0 0.0
  %469 = vmatprep.subr.mxu0 0.0
  %470 = vmatpush1.msra.mxu0 0.0
  %471 = vmatprep.subr.mxu0 0.0
  %472 = vmatpush1.msra.mxu0 0.0
  %473 = vmatprep.subr.mxu0 0.0
  %474 = vmatpush1.msra.mxu0 0.0
  %475 = vmatprep.subr.mxu0 0.0
  %476 = vmatpush1.msra.mxu0 0.0
  %477 = vmatprep.subr.mxu0 0.0
  %478 = vmatpush1.msra.mxu0 0.0
  %479 = vmatprep.mubr.f32.mxu0 0.0
  %480 = vmatmul.mubr.f32.gmra.mrb[0].mxu0 %v413
  %v481 = vpop.f32.mrb[0].mxu0
  %v482 = vadd.f32 %v410, %v481
  %v483 = vpop.f32.mrb[0].mxu0
  %v484 = vadd.f32 %v411, %v483
  %485 = vdwg.mxu0
  %486 = vst [vmem:[#allocation2] sm:$0xff] %v482
  %487 = vst [vmem:[#allocation2 + $0x8] sm:$0xff] %v484
  %v488 = vld [vmem:[%s3] sm:$0x1]
  %v489 = vld [vmem:[%s3 + $0x1] sm:$0x1]
  %v490 = vld [vmem:[#allocation2] ss:$8 sm:$0x3]
  %v492 = vsel %vm368, %v488, 0
  %494 = vmatprep.subr.mxu0 %v395
  %495 = vmatpush1.msra.mxu0 %v394
  %496 = vmatprep.subr.mxu0 %v397
  %497 = vmatpush1.msra.mxu0 %v396
  %498 = vmatprep.subr.mxu0 %v399
  %499 = vmatpush1.msra.mxu0 %v398
  %500 = vmatprep.subr.mxu0 %v401
  %501 = vmatpush1.msra.mxu0 %v400
  %502 = vmatprep.subr.mxu0 %v403
  %503 = vmatpush1.msra.mxu0 %v402
  %504 = vmatprep.subr.mxu0 %v405
  %505 = vmatpush1.msra.mxu0 %v404
  %506 = vmatprep.subr.mxu0 %v407
  %507 = vmatpush1.msra.mxu0 %v406
  %508 = vmatprep.subr.mxu0 %v409
  %509 = vmatpush1.msra.mxu0 %v408
  %510 = vmatprep.subr.mxu0 0.0
  %511 = vmatpush1.msra.mxu0 0.0
  %512 = vmatprep.subr.mxu0 0.0
  %513 = vmatpush1.msra.mxu0 0.0
  %514 = vmatprep.subr.mxu0 0.0
  %515 = vmatpush1.msra.mxu0 0.0
  %516 = vmatprep.subr.mxu0 0.0
  %517 = vmatpush1.msra.mxu0 0.0
  %518 = vmatprep.subr.mxu0 0.0
  %519 = vmatpush1.msra.mxu0 0.0
  %520 = vmatprep.subr.mxu0 0.0
  %521 = vmatpush1.msra.mxu0 0.0
  %522 = vmatprep.subr.mxu0 0.0
  %523 = vmatpush1.msra.mxu0 0.0
  %524 = vmatprep.subr.mxu0 0.0
  %525 = vmatpush1.msra.mxu0 0.0
  %526 = vmatprep.subr.mxu0 0.0
  %527 = vmatpush1.msra.mxu0 0.0
  %528 = vmatprep.subr.mxu0 0.0
  %529 = vmatpush1.msra.mxu0 0.0
  %530 = vmatprep.subr.mxu0 0.0
  %531 = vmatpush1.msra.mxu0 0.0
  %532 = vmatprep.subr.mxu0 0.0
  %533 = vmatpush1.msra.mxu0 0.0
  %534 = vmatprep.subr.mxu0 0.0
  %535 = vmatpush1.msra.mxu0 0.0
  %536 = vmatprep.subr.mxu0 0.0
  %537 = vmatpush1.msra.mxu0 0.0
  %538 = vmatprep.subr.mxu0 0.0
  %539 = vmatpush1.msra.mxu0 0.0
  %540 = vmatprep.subr.mxu0 0.0
  %541 = vmatpush1.msra.mxu0 0.0
  %542 = vmatprep.subr.mxu0 0.0
  %543 = vmatpush1.msra.mxu0 0.0
  %544 = vmatprep.subr.mxu0 0.0
  %545 = vmatpush1.msra.mxu0 0.0
  %546 = vmatprep.subr.mxu0 0.0
  %547 = vmatpush1.msra.mxu0 0.0
  %548 = vmatprep.subr.mxu0 0.0
  %549 = vmatpush1.msra.mxu0 0.0
  %550 = vmatprep.subr.mxu0 0.0
  %551 = vmatpush1.msra.mxu0 0.0
  %552 = vmatprep.subr.mxu0 0.0
  %553 = vmatpush1.msra.mxu0 0.0
  %554 = vmatprep.subr.mxu0 0.0
  %555 = vmatpush1.msra.mxu0 0.0
  %556 = vmatprep.subr.mxu0 0.0
  %557 = vmatpush1.msra.mxu0 0.0
  %558 = vmatprep.mubr.f32.mxu0 0.0
  %559 = vmatmul.mubr.f32.gmra.mrb[0].mxu0 %v492
  %v560 = vpop.f32.mrb[0].mxu0
  %v561 = vadd.f32 0.0, %v560
  %v562 = vpop.f32.mrb[0].mxu0
  %v563 = vadd.f32 0.0, %v562
  %564 = vdwg.mxu0
  %v567 = vcombine.low %v561, %v563
  %v569 = vunpack.c.l.s4 1966171168
  %v570 = vunpack.c.0.s8 %v569
  %v571 = vlaneseq
  %v572 = vshrl.u32 %v571, 7
  %v573 = vsub.s32 %v570, %v572
  %v574 = vrot.slane %v567, %v573
  %v576 = vunpack.c.l.s4 1966171168
  %v577 = vunpack.c.0.s8 %v576
  %v578 = vlaneseq
  %v579 = vshrl.u32 %v578, 7
  %v580 = vsub.s32 %v577, %v579
  %v581 = vrot.slane %v574, %v580
  %v583 = vadd.f32 %v490, %v581
  %v584 = vxor.u32 %v583, 2147483648
  %v585 = vmul.f32 %v584, 1.442695
  %v586 = vpow.pop %v585
  %v587 = vadd.f32 %v586, 1.0
  %v588 = vrcp.pop %v587
  %v589 = vmul.f32 1.0, %v588
  %591 = vrot.lane.b32.xlu0 %v583, 64
  %v592 = vpop.permute.xlu0 %591
  %v593 = vrot.slane %v592, 1
  %v595 = vtanh.pop %v593
  %v598 = vunpack.c.l.s4 1966171168
  %v599 = vunpack.c.0.s8 %v598
  %v600 = vlaneseq
  %v601 = vshrl.u32 %v600, 7
  %v602 = vsub.s32 %v599, %v601
  %v603 = vrot.slane %v489, %v602
  %v605 = vunpack.c.l.s4 1966171168
  %v606 = vunpack.c.0.s8 %v605
  %v607 = vlaneseq
  %v608 = vshrl.u32 %v607, 7
  %v609 = vsub.s32 %v606, %v608
  %v610 = vrot.slane %v603, %v609
  %611 = vrot.lane.b32.xlu0 %v610, 64
  %v612 = vpop.permute.xlu0 %611
  %v614 = vmul.f32 %v589, %v612
  %v615 = vmul.f32 %v589, %v595
  %617 = vrot.lane.b32.xlu0 %v615, 64
  %v618 = vpop.permute.xlu0 %617
  %v620 = vadd.f32 %v614, %v618
  %v621 = vtanh.pop %v620
  %v623 = vrot.slane %v589, 1
  %626 = vrot.lane.b32.xlu0 %v621, 64
  %v627 = vpop.permute.xlu0 %626
  %v629 = vmul.f32 %v623, %v627
  %s630 = scalar_lea.vmem [#allocation2], 1
  %v631 = vld [vmem:[%s630] ss:$8 sm:$0x3]
  %v633 = vsel %vm368, %v629, 0
  %635 = vmatprep.subr.mxu0 %v395
  %636 = vmatpush1.msra.mxu0 %v394
  %637 = vmatprep.subr.mxu0 %v397
  %638 = vmatpush1.msra.mxu0 %v396
  %639 = vmatprep.subr.mxu0 %v399
  %640 = vmatpush1.msra.mxu0 %v398
  %641 = vmatprep.subr.mxu0 %v401
  %642 = vmatpush1.msra.mxu0 %v400
  %643 = vmatprep.subr.mxu0 %v403
  %644 = vmatpush1.msra.mxu0 %v402
  %645 = vmatprep.subr.mxu0 %v405
  %646 = vmatpush1.msra.mxu0 %v404
  %647 = vmatprep.subr.mxu0 %v407
  %648 = vmatpush1.msra.mxu0 %v406
  %649 = vmatprep.subr.mxu0 %v409
  %650 = vmatpush1.msra.mxu0 %v408
  %651 = vmatprep.subr.mxu0 0.0
  %652 = vmatpush1.msra.mxu0 0.0
  %653 = vmatprep.subr.mxu0 0.0
  %654 = vmatpush1.msra.mxu0 0.0
  %655 = vmatprep.subr.mxu0 0.0
  %656 = vmatpush1.msra.mxu0 0.0
  %657 = vmatprep.subr.mxu0 0.0
  %658 = vmatpush1.msra.mxu0 0.0
  %659 = vmatprep.subr.mxu0 0.0
  %660 = vmatpush1.msra.mxu0 0.0
  %661 = vmatprep.subr.mxu0 0.0
  %662 = vmatpush1.msra.mxu0 0.0
  %663 = vmatprep.subr.mxu0 0.0
  %664 = vmatpush1.msra.mxu0 0.0
  %665 = vmatprep.subr.mxu0 0.0
  %666 = vmatpush1.msra.mxu0 0.0
  %667 = vmatprep.subr.mxu0 0.0
  %668 = vmatpush1.msra.mxu0 0.0
  %669 = vmatprep.subr.mxu0 0.0
  %670 = vmatpush1.msra.mxu0 0.0
  %671 = vmatprep.subr.mxu0 0.0
  %672 = vmatpush1.msra.mxu0 0.0
  %673 = vmatprep.subr.mxu0 0.0
  %674 = vmatpush1.msra.mxu0 0.0
  %675 = vmatprep.subr.mxu0 0.0
  %676 = vmatpush1.msra.mxu0 0.0
  %677 = vmatprep.subr.mxu0 0.0
  %678 = vmatpush1.msra.mxu0 0.0
  %679 = vmatprep.subr.mxu0 0.0
  %680 = vmatpush1.msra.mxu0 0.0
  %681 = vmatprep.subr.mxu0 0.0
  %682 = vmatpush1.msra.mxu0 0.0
  %683 = vmatprep.subr.mxu0 0.0
  %684 = vmatpush1.msra.mxu0 0.0
  %685 = vmatprep.subr.mxu0 0.0
  %686 = vmatpush1.msra.mxu0 0.0
  %687 = vmatprep.subr.mxu0 0.0
  %688 = vmatpush1.msra.mxu0 0.0
  %689 = vmatprep.subr.mxu0 0.0
  %690 = vmatpush1.msra.mxu0 0.0
  %691 = vmatprep.subr.mxu0 0.0
  %692 = vmatpush1.msra.mxu0 0.0
  %693 = vmatprep.subr.mxu0 0.0
  %694 = vmatpush1.msra.mxu0 0.0
  %695 = vmatprep.subr.mxu0 0.0
  %696 = vmatpush1.msra.mxu0 0.0
  %697 = vmatprep.subr.mxu0 0.0
  %698 = vmatpush1.msra.mxu0 0.0
  %699 = vmatprep.mubr.f32.mxu0 0.0
  %700 = vmatmul.mubr.f32.gmra.mrb[0].mxu0 %v633
  %v701 = vpop.f32.mrb[0].mxu0
  %v702 = vadd.f32 0.0, %v701
  %v703 = vpop.f32.mrb[0].mxu0
  %v704 = vadd.f32 0.0, %v703
  %705 = vdwg.mxu0
  %v708 = vcombine.low %v702, %v704
  %v710 = vunpack.c.l.s4 1966171168
  %v711 = vunpack.c.0.s8 %v710
  %v712 = vlaneseq
  %v713 = vshrl.u32 %v712, 7
  %v714 = vsub.s32 %v711, %v713
  %v715 = vrot.slane %v708, %v714
  %v717 = vunpack.c.l.s4 1966171168
  %v718 = vunpack.c.0.s8 %v717
  %v719 = vlaneseq
  %v720 = vshrl.u32 %v719, 7
  %v721 = vsub.s32 %v718, %v720
  %v722 = vrot.slane %v715, %v721
  %v724 = vadd.f32 %v631, %v722
  %v725 = vxor.u32 %v724, 2147483648
  %v726 = vmul.f32 %v725, 1.442695
  %v727 = vpow.pop %v726
  %v728 = vadd.f32 %v727, 1.0
  %v729 = vrcp.pop %v728
  %v730 = vmul.f32 1.0, %v729
  %732 = vrot.lane.b32.xlu0 %v724, 64
  %v733 = vpop.permute.xlu0 %732
  %v734 = vrot.slane %v733, 1
  %v736 = vtanh.pop %v734
  %v737 = vmul.f32 %v730, %v620
  %v738 = vmul.f32 %v730, %v736
  %740 = vrot.lane.b32.xlu0 %v738, 64
  %v741 = vpop.permute.xlu0 %740
  %v743 = vadd.f32 %v737, %v741
  %v744 = vtanh.pop %v743
  %v746 = vrot.slane %v730, 1
  %749 = vrot.lane.b32.xlu0 %v744, 64
  %v750 = vpop.permute.xlu0 %749
  %v752 = vmul.f32 %v746, %v750
  %s753 = scalar_lea.vmem [#allocation2], 2
  %v754 = vld [vmem:[%s753] ss:$8 sm:$0x3]
  %v756 = vsel %vm368, %v752, 0
  %758 = vmatprep.subr.mxu0 %v395
  %759 = vmatpush1.msra.mxu0 %v394
  %760 = vmatprep.subr.mxu0 %v397
  %761 = vmatpush1.msra.mxu0 %v396
  %762 = vmatprep.subr.mxu0 %v399
  %763 = vmatpush1.msra.mxu0 %v398
  %764 = vmatprep.subr.mxu0 %v401
  %765 = vmatpush1.msra.mxu0 %v400
  %766 = vmatprep.subr.mxu0 %v403
  %767 = vmatpush1.msra.mxu0 %v402
  %768 = vmatprep.subr.mxu0 %v405
  %769 = vmatpush1.msra.mxu0 %v404
  %770 = vmatprep.subr.mxu0 %v407
  %771 = vmatpush1.msra.mxu0 %v406
  %772 = vmatprep.subr.mxu0 %v409
  %773 = vmatpush1.msra.mxu0 %v408
  %774 = vmatprep.subr.mxu0 0.0
  %775 = vmatpush1.msra.mxu0 0.0
  %776 = vmatprep.subr.mxu0 0.0
  %777 = vmatpush1.msra.mxu0 0.0
  %778 = vmatprep.subr.mxu0 0.0
  %779 = vmatpush1.msra.mxu0 0.0
  %780 = vmatprep.subr.mxu0 0.0
  %781 = vmatpush1.msra.mxu0 0.0
  %782 = vmatprep.subr.mxu0 0.0
  %783 = vmatpush1.msra.mxu0 0.0
  %784 = vmatprep.subr.mxu0 0.0
  %785 = vmatpush1.msra.mxu0 0.0
  %786 = vmatprep.subr.mxu0 0.0
  %787 = vmatpush1.msra.mxu0 0.0
  %788 = vmatprep.subr.mxu0 0.0
  %789 = vmatpush1.msra.mxu0 0.0
  %790 = vmatprep.subr.mxu0 0.0
  %791 = vmatpush1.msra.mxu0 0.0
  %792 = vmatprep.subr.mxu0 0.0
  %793 = vmatpush1.msra.mxu0 0.0
  %794 = vmatprep.subr.mxu0 0.0
  %795 = vmatpush1.msra.mxu0 0.0
  %796 = vmatprep.subr.mxu0 0.0
  %797 = vmatpush1.msra.mxu0 0.0
  %798 = vmatprep.subr.mxu0 0.0
  %799 = vmatpush1.msra.mxu0 0.0
  %800 = vmatprep.subr.mxu0 0.0
  %801 = vmatpush1.msra.mxu0 0.0
  %802 = vmatprep.subr.mxu0 0.0
  %803 = vmatpush1.msra.mxu0 0.0
  %804 = vmatprep.subr.mxu0 0.0
  %805 = vmatpush1.msra.mxu0 0.0
  %806 = vmatprep.subr.mxu0 0.0
  %807 = vmatpush1.msra.mxu0 0.0
  %808 = vmatprep.subr.mxu0 0.0
  %809 = vmatpush1.msra.mxu0 0.0
  %810 = vmatprep.subr.mxu0 0.0
  %811 = vmatpush1.msra.mxu0 0.0
  %812 = vmatprep.subr.mxu0 0.0
  %813 = vmatpush1.msra.mxu0 0.0
  %814 = vmatprep.subr.mxu0 0.0
  %815 = vmatpush1.msra.mxu0 0.0
  %816 = vmatprep.subr.mxu0 0.0
  %817 = vmatpush1.msra.mxu0 0.0
  %818 = vmatprep.subr.mxu0 0.0
  %819 = vmatpush1.msra.mxu0 0.0
  %820 = vmatprep.subr.mxu0 0.0
  %821 = vmatpush1.msra.mxu0 0.0
  %822 = vmatprep.mubr.f32.mxu0 0.0
  %823 = vmatmul.mubr.f32.gmra.mrb[0].mxu0 %v756
  %v824 = vpop.f32.mrb[0].mxu0
  %v825 = vadd.f32 0.0, %v824
  %v826 = vpop.f32.mrb[0].mxu0
  %v827 = vadd.f32 0.0, %v826
  %828 = vdwg.mxu0
  %v831 = vcombine.low %v825, %v827
  %v833 = vunpack.c.l.s4 1966171168
  %v834 = vunpack.c.0.s8 %v833
  %v835 = vlaneseq
  %v836 = vshrl.u32 %v835, 7
  %v837 = vsub.s32 %v834, %v836
  %v838 = vrot.slane %v831, %v837
  %v840 = vunpack.c.l.s4 1966171168
  %v841 = vunpack.c.0.s8 %v840
  %v842 = vlaneseq
  %v843 = vshrl.u32 %v842, 7
  %v844 = vsub.s32 %v841, %v843
  %v845 = vrot.slane %v838, %v844
  %v847 = vadd.f32 %v754, %v845
  %v848 = vxor.u32 %v847, 2147483648
  %v849 = vmul.f32 %v848, 1.442695
  %v850 = vpow.pop %v849
  %v851 = vadd.f32 %v850, 1.0
  %v852 = vrcp.pop %v851
  %v853 = vmul.f32 1.0, %v852
  %855 = vrot.lane.b32.xlu0 %v847, 64
  %v856 = vpop.permute.xlu0 %855
  %v857 = vrot.slane %v856, 1
  %v859 = vtanh.pop %v857
  %v860 = vmul.f32 %v853, %v743
  %v861 = vmul.f32 %v853, %v859
  %863 = vrot.lane.b32.xlu0 %v861, 64
  %v864 = vpop.permute.xlu0 %863
  %v866 = vadd.f32 %v860, %v864
  %v867 = vtanh.pop %v866
  %v869 = vrot.slane %v853, 1
  %872 = vrot.lane.b32.xlu0 %v867, 64
  %v873 = vpop.permute.xlu0 %872
  %v875 = vmul.f32 %v869, %v873
  %s876 = scalar_lea.vmem [#allocation2], 3
  %v877 = vld [vmem:[%s876] ss:$8 sm:$0x3]
  %v879 = vsel %vm368, %v875, 0
  %881 = vmatprep.subr.mxu0 %v395
  %882 = vmatpush1.msra.mxu0 %v394
  %883 = vmatprep.subr.mxu0 %v397
  %884 = vmatpush1.msra.mxu0 %v396
  %885 = vmatprep.subr.mxu0 %v399
  %886 = vmatpush1.msra.mxu0 %v398
  %887 = vmatprep.subr.mxu0 %v401
  %888 = vmatpush1.msra.mxu0 %v400
  %889 = vmatprep.subr.mxu0 %v403
  %890 = vmatpush1.msra.mxu0 %v402
  %891 = vmatprep.subr.mxu0 %v405
  %892 = vmatpush1.msra.mxu0 %v404
  %893 = vmatprep.subr.mxu0 %v407
  %894 = vmatpush1.msra.mxu0 %v406
  %895 = vmatprep.subr.mxu0 %v409
  %896 = vmatpush1.msra.mxu0 %v408
  %897 = vmatprep.subr.mxu0 0.0
  %898 = vmatpush1.msra.mxu0 0.0
  %899 = vmatprep.subr.mxu0 0.0
  %900 = vmatpush1.msra.mxu0 0.0
  %901 = vmatprep.subr.mxu0 0.0
  %902 = vmatpush1.msra.mxu0 0.0
  %903 = vmatprep.subr.mxu0 0.0
  %904 = vmatpush1.msra.mxu0 0.0
  %905 = vmatprep.subr.mxu0 0.0
  %906 = vmatpush1.msra.mxu0 0.0
  %907 = vmatprep.subr.mxu0 0.0
  %908 = vmatpush1.msra.mxu0 0.0
  %909 = vmatprep.subr.mxu0 0.0
  %910 = vmatpush1.msra.mxu0 0.0
  %911 = vmatprep.subr.mxu0 0.0
  %912 = vmatpush1.msra.mxu0 0.0
  %913 = vmatprep.subr.mxu0 0.0
  %914 = vmatpush1.msra.mxu0 0.0
  %915 = vmatprep.subr.mxu0 0.0
  %916 = vmatpush1.msra.mxu0 0.0
  %917 = vmatprep.subr.mxu0 0.0
  %918 = vmatpush1.msra.mxu0 0.0
  %919 = vmatprep.subr.mxu0 0.0
  %920 = vmatpush1.msra.mxu0 0.0
  %921 = vmatprep.subr.mxu0 0.0
  %922 = vmatpush1.msra.mxu0 0.0
  %923 = vmatprep.subr.mxu0 0.0
  %924 = vmatpush1.msra.mxu0 0.0
  %925 = vmatprep.subr.mxu0 0.0
  %926 = vmatpush1.msra.mxu0 0.0
  %927 = vmatprep.subr.mxu0 0.0
  %928 = vmatpush1.msra.mxu0 0.0
  %929 = vmatprep.subr.mxu0 0.0
  %930 = vmatpush1.msra.mxu0 0.0
  %931 = vmatprep.subr.mxu0 0.0
  %932 = vmatpush1.msra.mxu0 0.0
  %933 = vmatprep.subr.mxu0 0.0
  %934 = vmatpush1.msra.mxu0 0.0
  %935 = vmatprep.subr.mxu0 0.0
  %936 = vmatpush1.msra.mxu0 0.0
  %937 = vmatprep.subr.mxu0 0.0
  %938 = vmatpush1.msra.mxu0 0.0
  %939 = vmatprep.subr.mxu0 0.0
  %940 = vmatpush1.msra.mxu0 0.0
  %941 = vmatprep.subr.mxu0 0.0
  %942 = vmatpush1.msra.mxu0 0.0
  %943 = vmatprep.subr.mxu0 0.0
  %944 = vmatpush1.msra.mxu0 0.0
  %945 = vmatprep.mubr.f32.mxu0 0.0
  %946 = vmatmul.mubr.f32.gmra.mrb[0].mxu0 %v879
  %v947 = vpop.f32.mrb[0].mxu0
  %v948 = vadd.f32 0.0, %v947
  %v949 = vpop.f32.mrb[0].mxu0
  %v950 = vadd.f32 0.0, %v949
  %951 = vdwg.mxu0
  %v954 = vcombine.low %v948, %v950
  %v956 = vunpack.c.l.s4 1966171168
  %v957 = vunpack.c.0.s8 %v956
  %v958 = vlaneseq
  %v959 = vshrl.u32 %v958, 7
  %v960 = vsub.s32 %v957, %v959
  %v961 = vrot.slane %v954, %v960
  %v963 = vunpack.c.l.s4 1966171168
  %v964 = vunpack.c.0.s8 %v963
  %v965 = vlaneseq
  %v966 = vshrl.u32 %v965, 7
  %v967 = vsub.s32 %v964, %v966
  %v968 = vrot.slane %v961, %v967
  %v970 = vadd.f32 %v877, %v968
  %v971 = vxor.u32 %v970, 2147483648
  %v972 = vmul.f32 %v971, 1.442695
  %v973 = vpow.pop %v972
  %v974 = vadd.f32 %v973, 1.0
  %v975 = vrcp.pop %v974
  %v976 = vmul.f32 1.0, %v975
  %978 = vrot.lane.b32.xlu0 %v970, 64
  %v979 = vpop.permute.xlu0 %978
  %v980 = vrot.slane %v979, 1
  %v982 = vtanh.pop %v980
  %v983 = vmul.f32 %v976, %v866
  %v984 = vmul.f32 %v976, %v982
  %986 = vrot.lane.b32.xlu0 %v984, 64
  %v987 = vpop.permute.xlu0 %986
  %v989 = vadd.f32 %v983, %v987
  %v990 = vtanh.pop %v989
  %v992 = vrot.slane %v976, 1
  %995 = vrot.lane.b32.xlu0 %v990, 64
  %v996 = vpop.permute.xlu0 %995
  %v998 = vmul.f32 %v992, %v996
  %s999 = scalar_lea.vmem [#allocation2], 4
  %v1000 = vld [vmem:[%s999] ss:$8 sm:$0x3]
  %v1002 = vsel %vm368, %v998, 0
  %1004 = vmatprep.subr.mxu0 %v395
  %1005 = vmatpush1.msra.mxu0 %v394
  %1006 = vmatprep.subr.mxu0 %v397
  %1007 = vmatpush1.msra.mxu0 %v396
  %1008 = vmatprep.subr.mxu0 %v399
  %1009 = vmatpush1.msra.mxu0 %v398
  %1010 = vmatprep.subr.mxu0 %v401
  %1011 = vmatpush1.msra.mxu0 %v400
  %1012 = vmatprep.subr.mxu0 %v403
  %1013 = vmatpush1.msra.mxu0 %v402
  %1014 = vmatprep.subr.mxu0 %v405
  %1015 = vmatpush1.msra.mxu0 %v404
  %1016 = vmatprep.subr.mxu0 %v407
  %1017 = vmatpush1.msra.mxu0 %v406
  %1018 = vmatprep.subr.mxu0 %v409
  %1019 = vmatpush1.msra.mxu0 %v408
  %1020 = vmatprep.subr.mxu0 0.0
  %1021 = vmatpush1.msra.mxu0 0.0
  %1022 = vmatprep.subr.mxu0 0.0
  %1023 = vmatpush1.msra.mxu0 0.0
  %1024 = vmatprep.subr.mxu0 0.0
  %1025 = vmatpush1.msra.mxu0 0.0
  %1026 = vmatprep.subr.mxu0 0.0
  %1027 = vmatpush1.msra.mxu0 0.0
  %1028 = vmatprep.subr.mxu0 0.0
  %1029 = vmatpush1.msra.mxu0 0.0
  %1030 = vmatprep.subr.mxu0 0.0
  %1031 = vmatpush1.msra.mxu0 0.0
  %1032 = vmatprep.subr.mxu0 0.0
  %1033 = vmatpush1.msra.mxu0 0.0
  %1034 = vmatprep.subr.mxu0 0.0
  %1035 = vmatpush1.msra.mxu0 0.0
  %1036 = vmatprep.subr.mxu0 0.0
  %1037 = vmatpush1.msra.mxu0 0.0
  %1038 = vmatprep.subr.mxu0 0.0
  %1039 = vmatpush1.msra.mxu0 0.0
  %1040 = vmatprep.subr.mxu0 0.0
  %1041 = vmatpush1.msra.mxu0 0.0
  %1042 = vmatprep.subr.mxu0 0.0
  %1043 = vmatpush1.msra.mxu0 0.0
  %1044 = vmatprep.subr.mxu0 0.0
  %1045 = vmatpush1.msra.mxu0 0.0
  %1046 = vmatprep.subr.mxu0 0.0
  %1047 = vmatpush1.msra.mxu0 0.0
  %1048 = vmatprep.subr.mxu0 0.0
  %1049 = vmatpush1.msra.mxu0 0.0
  %1050 = vmatprep.subr.mxu0 0.0
  %1051 = vmatpush1.msra.mxu0 0.0
  %1052 = vmatprep.subr.mxu0 0.0
  %1053 = vmatpush1.msra.mxu0 0.0
  %1054 = vmatprep.subr.mxu0 0.0
  %1055 = vmatpush1.msra.mxu0 0.0
  %1056 = vmatprep.subr.mxu0 0.0
  %1057 = vmatpush1.msra.mxu0 0.0
  %1058 = vmatprep.subr.mxu0 0.0
  %1059 = vmatpush1.msra.mxu0 0.0
  %1060 = vmatprep.subr.mxu0 0.0
  %1061 = vmatpush1.msra.mxu0 0.0
  %1062 = vmatprep.subr.mxu0 0.0
  %1063 = vmatpush1.msra.mxu0 0.0
  %1064 = vmatprep.subr.mxu0 0.0
  %1065 = vmatpush1.msra.mxu0 0.0
  %1066 = vmatprep.subr.mxu0 0.0
  %1067 = vmatpush1.msra.mxu0 0.0
  %1068 = vmatprep.mubr.f32.mxu0 0.0
  %1069 = vmatmul.mubr.f32.gmra.mrb[0].mxu0 %v1002
  %v1070 = vpop.f32.mrb[0].mxu0
  %v1071 = vadd.f32 0.0, %v1070
  %v1072 = vpop.f32.mrb[0].mxu0
  %v1073 = vadd.f32 0.0, %v1072
  %1074 = vdwg.mxu0
  %v1077 = vcombine.low %v1071, %v1073
  %v1079 = vunpack.c.l.s4 1966171168
  %v1080 = vunpack.c.0.s8 %v1079
  %v1081 = vlaneseq
  %v1082 = vshrl.u32 %v1081, 7
  %v1083 = vsub.s32 %v1080, %v1082
  %v1084 = vrot.slane %v1077, %v1083
  %v1086 = vunpack.c.l.s4 1966171168
  %v1087 = vunpack.c.0.s8 %v1086
  %v1088 = vlaneseq
  %v1089 = vshrl.u32 %v1088, 7
  %v1090 = vsub.s32 %v1087, %v1089
  %v1091 = vrot.slane %v1084, %v1090
  %v1093 = vadd.f32 %v1000, %v1091
  %v1094 = vxor.u32 %v1093, 2147483648
  %v1095 = vmul.f32 %v1094, 1.442695
  %v1096 = vpow.pop %v1095
  %v1097 = vadd.f32 %v1096, 1.0
  %v1098 = vrcp.pop %v1097
  %v1099 = vmul.f32 1.0, %v1098
  %1101 = vrot.lane.b32.xlu0 %v1093, 64
  %v1102 = vpop.permute.xlu0 %1101
  %v1103 = vrot.slane %v1102, 1
  %v1105 = vtanh.pop %v1103
  %v1106 = vmul.f32 %v1099, %v989
  %v1107 = vmul.f32 %v1099, %v1105
  %1109 = vrot.lane.b32.xlu0 %v1107, 64
  %v1110 = vpop.permute.xlu0 %1109
  %v1112 = vadd.f32 %v1106, %v1110
  %v1113 = vtanh.pop %v1112
  %v1115 = vrot.slane %v1099, 1
  %1118 = vrot.lane.b32.xlu0 %v1113, 64
  %v1119 = vpop.permute.xlu0 %1118
  %v1121 = vmul.f32 %v1115, %v1119
  %s1122 = scalar_lea.vmem [#allocation2], 5
  %v1123 = vld [vmem:[%s1122] ss:$8 sm:$0x3]
  %v1125 = vsel %vm368, %v1121, 0
  %1127 = vmatprep.subr.mxu0 %v395
  %1128 = vmatpush1.msra.mxu0 %v394
  %1129 = vmatprep.subr.mxu0 %v397
  %1130 = vmatpush1.msra.mxu0 %v396
  %1131 = vmatprep.subr.mxu0 %v399
  %1132 = vmatpush1.msra.mxu0 %v398
  %1133 = vmatprep.subr.mxu0 %v401
  %1134 = vmatpush1.msra.mxu0 %v400
  %1135 = vmatprep.subr.mxu0 %v403
  %1136 = vmatpush1.msra.mxu0 %v402
  %1137 = vmatprep.subr.mxu0 %v405
  %1138 = vmatpush1.msra.mxu0 %v404
  %1139 = vmatprep.subr.mxu0 %v407
  %1140 = vmatpush1.msra.mxu0 %v406
  %1141 = vmatprep.subr.mxu0 %v409
  %1142 = vmatpush1.msra.mxu0 %v408
  %1143 = vmatprep.subr.mxu0 0.0
  %1144 = vmatpush1.msra.mxu0 0.0
  %1145 = vmatprep.subr.mxu0 0.0
  %1146 = vmatpush1.msra.mxu0 0.0
  %1147 = vmatprep.subr.mxu0 0.0
  %1148 = vmatpush1.msra.mxu0 0.0
  %1149 = vmatprep.subr.mxu0 0.0
  %1150 = vmatpush1.msra.mxu0 0.0
  %1151 = vmatprep.subr.mxu0 0.0
  %1152 = vmatpush1.msra.mxu0 0.0
  %1153 = vmatprep.subr.mxu0 0.0
  %1154 = vmatpush1.msra.mxu0 0.0
  %1155 = vmatprep.subr.mxu0 0.0
  %1156 = vmatpush1.msra.mxu0 0.0
  %1157 = vmatprep.subr.mxu0 0.0
  %1158 = vmatpush1.msra.mxu0 0.0
  %1159 = vmatprep.subr.mxu0 0.0
  %1160 = vmatpush1.msra.mxu0 0.0
  %1161 = vmatprep.subr.mxu0 0.0
  %1162 = vmatpush1.msra.mxu0 0.0
  %1163 = vmatprep.subr.mxu0 0.0
  %1164 = vmatpush1.msra.mxu0 0.0
  %1165 = vmatprep.subr.mxu0 0.0
  %1166 = vmatpush1.msra.mxu0 0.0
  %1167 = vmatprep.subr.mxu0 0.0
  %1168 = vmatpush1.msra.mxu0 0.0
  %1169 = vmatprep.subr.mxu0 0.0
  %1170 = vmatpush1.msra.mxu0 0.0
  %1171 = vmatprep.subr.mxu0 0.0
  %1172 = vmatpush1.msra.mxu0 0.0
  %1173 = vmatprep.subr.mxu0 0.0
  %1174 = vmatpush1.msra.mxu0 0.0
  %1175 = vmatprep.subr.mxu0 0.0
  %1176 = vmatpush1.msra.mxu0 0.0
  %1177 = vmatprep.subr.mxu0 0.0
  %1178 = vmatpush1.msra.mxu0 0.0
  %1179 = vmatprep.subr.mxu0 0.0
  %1180 = vmatpush1.msra.mxu0 0.0
  %1181 = vmatprep.subr.mxu0 0.0
  %1182 = vmatpush1.msra.mxu0 0.0
  %1183 = vmatprep.subr.mxu0 0.0
  %1184 = vmatpush1.msra.mxu0 0.0
  %1185 = vmatprep.subr.mxu0 0.0
  %1186 = vmatpush1.msra.mxu0 0.0
  %1187 = vmatprep.subr.mxu0 0.0
  %1188 = vmatpush1.msra.mxu0 0.0
  %1189 = vmatprep.subr.mxu0 0.0
  %1190 = vmatpush1.msra.mxu0 0.0
  %1191 = vmatprep.mubr.f32.mxu0 0.0
  %1192 = vmatmul.mubr.f32.gmra.mrb[0].mxu0 %v1125
  %v1193 = vpop.f32.mrb[0].mxu0
  %v1194 = vadd.f32 0.0, %v1193
  %v1195 = vpop.f32.mrb[0].mxu0
  %v1196 = vadd.f32 0.0, %v1195
  %1197 = vdwg.mxu0
  %v1200 = vcombine.low %v1194, %v1196
  %v1202 = vunpack.c.l.s4 1966171168
  %v1203 = vunpack.c.0.s8 %v1202
  %v1204 = vlaneseq
  %v1205 = vshrl.u32 %v1204, 7
  %v1206 = vsub.s32 %v1203, %v1205
  %v1207 = vrot.slane %v1200, %v1206
  %v1209 = vunpack.c.l.s4 1966171168
  %v1210 = vunpack.c.0.s8 %v1209
  %v1211 = vlaneseq
  %v1212 = vshrl.u32 %v1211, 7
  %v1213 = vsub.s32 %v1210, %v1212
  %v1214 = vrot.slane %v1207, %v1213
  %v1216 = vadd.f32 %v1123, %v1214
  %v1217 = vxor.u32 %v1216, 2147483648
  %v1218 = vmul.f32 %v1217, 1.442695
  %v1219 = vpow.pop %v1218
  %v1220 = vadd.f32 %v1219, 1.0
  %v1221 = vrcp.pop %v1220
  %v1222 = vmul.f32 1.0, %v1221
  %1224 = vrot.lane.b32.xlu0 %v1216, 64
  %v1225 = vpop.permute.xlu0 %1224
  %v1226 = vrot.slane %v1225, 1
  %v1228 = vtanh.pop %v1226
  %v1229 = vmul.f32 %v1222, %v1112
  %v1230 = vmul.f32 %v1222, %v1228
  %1232 = vrot.lane.b32.xlu0 %v1230, 64
  %v1233 = vpop.permute.xlu0 %1232
  %v1235 = vadd.f32 %v1229, %v1233
  %v1236 = vtanh.pop %v1235
  %v1238 = vrot.slane %v1222, 1
  %1241 = vrot.lane.b32.xlu0 %v1236, 64
  %v1242 = vpop.permute.xlu0 %1241
  %v1244 = vmul.f32 %v1238, %v1242
  %s1245 = scalar_lea.vmem [#allocation2], 6
  %v1246 = vld [vmem:[%s1245] ss:$8 sm:$0x3]
  %v1248 = vsel %vm368, %v1244, 0
  %1250 = vmatprep.subr.mxu0 %v395
  %1251 = vmatpush1.msra.mxu0 %v394
  %1252 = vmatprep.subr.mxu0 %v397
  %1253 = vmatpush1.msra.mxu0 %v396
  %1254 = vmatprep.subr.mxu0 %v399
  %1255 = vmatpush1.msra.mxu0 %v398
  %1256 = vmatprep.subr.mxu0 %v401
  %1257 = vmatpush1.msra.mxu0 %v400
  %1258 = vmatprep.subr.mxu0 %v403
  %1259 = vmatpush1.msra.mxu0 %v402
  %1260 = vmatprep.subr.mxu0 %v405
  %1261 = vmatpush1.msra.mxu0 %v404
  %1262 = vmatprep.subr.mxu0 %v407
  %1263 = vmatpush1.msra.mxu0 %v406
  %1264 = vmatprep.subr.mxu0 %v409
  %1265 = vmatpush1.msra.mxu0 %v408
  %1266 = vmatprep.subr.mxu0 0.0
  %1267 = vmatpush1.msra.mxu0 0.0
  %1268 = vmatprep.subr.mxu0 0.0
  %1269 = vmatpush1.msra.mxu0 0.0
  %1270 = vmatprep.subr.mxu0 0.0
  %1271 = vmatpush1.msra.mxu0 0.0
  %1272 = vmatprep.subr.mxu0 0.0
  %1273 = vmatpush1.msra.mxu0 0.0
  %1274 = vmatprep.subr.mxu0 0.0
  %1275 = vmatpush1.msra.mxu0 0.0
  %1276 = vmatprep.subr.mxu0 0.0
  %1277 = vmatpush1.msra.mxu0 0.0
  %1278 = vmatprep.subr.mxu0 0.0
  %1279 = vmatpush1.msra.mxu0 0.0
  %1280 = vmatprep.subr.mxu0 0.0
  %1281 = vmatpush1.msra.mxu0 0.0
  %1282 = vmatprep.subr.mxu0 0.0
  %1283 = vmatpush1.msra.mxu0 0.0
  %1284 = vmatprep.subr.mxu0 0.0
  %1285 = vmatpush1.msra.mxu0 0.0
  %1286 = vmatprep.subr.mxu0 0.0
  %1287 = vmatpush1.msra.mxu0 0.0
  %1288 = vmatprep.subr.mxu0 0.0
  %1289 = vmatpush1.msra.mxu0 0.0
  %1290 = vmatprep.subr.mxu0 0.0
  %1291 = vmatpush1.msra.mxu0 0.0
  %1292 = vmatprep.subr.mxu0 0.0
  %1293 = vmatpush1.msra.mxu0 0.0
  %1294 = vmatprep.subr.mxu0 0.0
  %1295 = vmatpush1.msra.mxu0 0.0
  %1296 = vmatprep.subr.mxu0 0.0
  %1297 = vmatpush1.msra.mxu0 0.0
  %1298 = vmatprep.subr.mxu0 0.0
  %1299 = vmatpush1.msra.mxu0 0.0
  %1300 = vmatprep.subr.mxu0 0.0
  %1301 = vmatpush1.msra.mxu0 0.0
  %1302 = vmatprep.subr.mxu0 0.0
  %1303 = vmatpush1.msra.mxu0 0.0
  %1304 = vmatprep.subr.mxu0 0.0
  %1305 = vmatpush1.msra.mxu0 0.0
  %1306 = vmatprep.subr.mxu0 0.0
  %1307 = vmatpush1.msra.mxu0 0.0
  %1308 = vmatprep.subr.mxu0 0.0
  %1309 = vmatpush1.msra.mxu0 0.0
  %1310 = vmatprep.subr.mxu0 0.0
  %1311 = vmatpush1.msra.mxu0 0.0
  %1312 = vmatprep.subr.mxu0 0.0
  %1313 = vmatpush1.msra.mxu0 0.0
  %1314 = vmatprep.mubr.f32.mxu0 0.0
  %1315 = vmatmul.mubr.f32.gmra.mrb[0].mxu0 %v1248
  %v1316 = vpop.f32.mrb[0].mxu0
  %v1317 = vadd.f32 0.0, %v1316
  %v1318 = vpop.f32.mrb[0].mxu0
  %v1319 = vadd.f32 0.0, %v1318
  %1320 = vdwg.mxu0
  %v1323 = vcombine.low %v1317, %v1319
  %v1325 = vunpack.c.l.s4 1966171168
  %v1326 = vunpack.c.0.s8 %v1325
  %v1327 = vlaneseq
  %v1328 = vshrl.u32 %v1327, 7
  %v1329 = vsub.s32 %v1326, %v1328
  %v1330 = vrot.slane %v1323, %v1329
  %v1332 = vunpack.c.l.s4 1966171168
  %v1333 = vunpack.c.0.s8 %v1332
  %v1334 = vlaneseq
  %v1335 = vshrl.u32 %v1334, 7
  %v1336 = vsub.s32 %v1333, %v1335
  %v1337 = vrot.slane %v1330, %v1336
  %v1339 = vadd.f32 %v1246, %v1337
  %v1340 = vxor.u32 %v1339, 2147483648
  %v1341 = vmul.f32 %v1340, 1.442695
  %v1342 = vpow.pop %v1341
  %v1343 = vadd.f32 %v1342, 1.0
  %v1344 = vrcp.pop %v1343
  %v1345 = vmul.f32 1.0, %v1344
  %1347 = vrot.lane.b32.xlu0 %v1339, 64
  %v1348 = vpop.permute.xlu0 %1347
  %v1349 = vrot.slane %v1348, 1
  %v1351 = vtanh.pop %v1349
  %v1352 = vmul.f32 %v1345, %v1235
  %v1353 = vmul.f32 %v1345, %v1351
  %1355 = vrot.lane.b32.xlu0 %v1353, 64
  %v1356 = vpop.permute.xlu0 %1355
  %v1358 = vadd.f32 %v1352, %v1356
  %v1359 = vtanh.pop %v1358
  %v1361 = vrot.slane %v1345, 1
  %1364 = vrot.lane.b32.xlu0 %v1359, 64
  %v1365 = vpop.permute.xlu0 %1364
  %v1367 = vmul.f32 %v1361, %v1365
  %s1368 = scalar_lea.vmem [#allocation2], 7
  %v1369 = vld [vmem:[%s1368] ss:$8 sm:$0x3]
  %v1371 = vsel %vm368, %v1367, 0
  %1373 = vmatprep.subr.mxu0 %v395
  %1374 = vmatpush1.msra.mxu0 %v394
  %1375 = vmatprep.subr.mxu0 %v397
  %1376 = vmatpush1.msra.mxu0 %v396
  %1377 = vmatprep.subr.mxu0 %v399
  %1378 = vmatpush1.msra.mxu0 %v398
  %1379 = vmatprep.subr.mxu0 %v401
  %1380 = vmatpush1.msra.mxu0 %v400
  %1381 = vmatprep.subr.mxu0 %v403
  %1382 = vmatpush1.msra.mxu0 %v402
  %1383 = vmatprep.subr.mxu0 %v405
  %1384 = vmatpush1.msra.mxu0 %v404
  %1385 = vmatprep.subr.mxu0 %v407
  %1386 = vmatpush1.msra.mxu0 %v406
  %1387 = vmatprep.subr.mxu0 %v409
  %1388 = vmatpush1.msra.mxu0 %v408
  %1389 = vmatprep.subr.mxu0 0.0
  %1390 = vmatpush1.msra.mxu0 0.0
  %1391 = vmatprep.subr.mxu0 0.0
  %1392 = vmatpush1.msra.mxu0 0.0
  %1393 = vmatprep.subr.mxu0 0.0
  %1394 = vmatpush1.msra.mxu0 0.0
  %1395 = vmatprep.subr.mxu0 0.0
  %1396 = vmatpush1.msra.mxu0 0.0
  %1397 = vmatprep.subr.mxu0 0.0
  %1398 = vmatpush1.msra.mxu0 0.0
  %1399 = vmatprep.subr.mxu0 0.0
  %1400 = vmatpush1.msra.mxu0 0.0
  %1401 = vmatprep.subr.mxu0 0.0
  %1402 = vmatpush1.msra.mxu0 0.0
  %1403 = vmatprep.subr.mxu0 0.0
  %1404 = vmatpush1.msra.mxu0 0.0
  %1405 = vmatprep.subr.mxu0 0.0
  %1406 = vmatpush1.msra.mxu0 0.0
  %1407 = vmatprep.subr.mxu0 0.0
  %1408 = vmatpush1.msra.mxu0 0.0
  %1409 = vmatprep.subr.mxu0 0.0
  %1410 = vmatpush1.msra.mxu0 0.0
  %1411 = vmatprep.subr.mxu0 0.0
  %1412 = vmatpush1.msra.mxu0 0.0
  %1413 = vmatprep.subr.mxu0 0.0
  %1414 = vmatpush1.msra.mxu0 0.0
  %1415 = vmatprep.subr.mxu0 0.0
  %1416 = vmatpush1.msra.mxu0 0.0
  %1417 = vmatprep.subr.mxu0 0.0
  %1418 = vmatpush1.msra.mxu0 0.0
  %1419 = vmatprep.subr.mxu0 0.0
  %1420 = vmatpush1.msra.mxu0 0.0
  %1421 = vmatprep.subr.mxu0 0.0
  %1422 = vmatpush1.msra.mxu0 0.0
  %1423 = vmatprep.subr.mxu0 0.0
  %1424 = vmatpush1.msra.mxu0 0.0
  %1425 = vmatprep.subr.mxu0 0.0
  %1426 = vmatpush1.msra.mxu0 0.0
  %1427 = vmatprep.subr.mxu0 0.0
  %1428 = vmatpush1.msra.mxu0 0.0
  %1429 = vmatprep.subr.mxu0 0.0
  %1430 = vmatpush1.msra.mxu0 0.0
  %1431 = vmatprep.subr.mxu0 0.0
  %1432 = vmatpush1.msra.mxu0 0.0
  %1433 = vmatprep.subr.mxu0 0.0
  %1434 = vmatpush1.msra.mxu0 0.0
  %1435 = vmatprep.subr.mxu0 0.0
  %1436 = vmatpush1.msra.mxu0 0.0
  %1437 = vmatprep.mubr.f32.mxu0 0.0
  %1438 = vmatmul.mubr.f32.gmra.mrb[0].mxu0 %v1371
  %v1439 = vpop.f32.mrb[0].mxu0
  %v1440 = vadd.f32 0.0, %v1439
  %v1441 = vpop.f32.mrb[0].mxu0
  %v1442 = vadd.f32 0.0, %v1441
  %1443 = vdwg.mxu0
  %v1446 = vcombine.low %v1440, %v1442
  %v1448 = vunpack.c.l.s4 1966171168
  %v1449 = vunpack.c.0.s8 %v1448
  %v1450 = vlaneseq
  %v1451 = vshrl.u32 %v1450, 7
  %v1452 = vsub.s32 %v1449, %v1451
  %v1453 = vrot.slane %v1446, %v1452
  %v1455 = vunpack.c.l.s4 1966171168
  %v1456 = vunpack.c.0.s8 %v1455
  %v1457 = vlaneseq
  %v1458 = vshrl.u32 %v1457, 7
  %v1459 = vsub.s32 %v1456, %v1458
  %v1460 = vrot.slane %v1453, %v1459
  %v1462 = vadd.f32 %v1369, %v1460
  %v1463 = vxor.u32 %v1462, 2147483648
  %v1464 = vmul.f32 %v1463, 1.442695
  %v1465 = vpow.pop %v1464
  %v1466 = vadd.f32 %v1465, 1.0
  %v1467 = vrcp.pop %v1466
  %v1468 = vmul.f32 1.0, %v1467
  %1470 = vrot.lane.b32.xlu0 %v1462, 64
  %v1471 = vpop.permute.xlu0 %1470
  %v1472 = vrot.slane %v1471, 1
  %v1474 = vtanh.pop %v1472
  %v1475 = vmul.f32 %v1468, %v1358
  %v1476 = vmul.f32 %v1468, %v1474
  %1478 = vrot.lane.b32.xlu0 %v1476, 64
  %v1479 = vpop.permute.xlu0 %1478
  %v1481 = vadd.f32 %v1475, %v1479
  %v1482 = vtanh.pop %v1481
  %v1484 = vrot.slane %v1468, 1
  %1487 = vrot.lane.b32.xlu0 %v1482, 64
  %v1488 = vpop.permute.xlu0 %1487
  %v1490 = vmul.f32 %v1484, %v1488
  %v1491 = vld [vmem:[%s8] sm:$0xff]
  %v1492 = vld [vmem:[%s8 + $0x8] sm:$0xff]
  %v1493 = vld [vmem:[%s8 + $0x10] sm:$0xff]
  %v1494 = vld [vmem:[%s8 + $0x18] sm:$0xff]
  %v1495 = vld [vmem:[%s8 + $0x20] sm:$0xff]
  %v1496 = vld [vmem:[%s8 + $0x28] sm:$0xff]
  %v1497 = vld [vmem:[%s8 + $0x30] sm:$0xff]
  %v1498 = vld [vmem:[%s8 + $0x38] sm:$0xff]
  %v1499 = vld [vmem:[%s8 + $0x40] sm:$0xff]
  %v1500 = vld [vmem:[%s8 + $0x48] sm:$0xff]
  %v1501 = vld [vmem:[%s8 + $0x50] sm:$0xff]
  %v1502 = vld [vmem:[%s8 + $0x58] sm:$0xff]
  %v1503 = vld [vmem:[%s8 + $0x60] sm:$0xff]
  %v1504 = vld [vmem:[%s8 + $0x68] sm:$0xff]
  %v1505 = vld [vmem:[%s8 + $0x70] sm:$0xff]
  %v1506 = vld [vmem:[%s8 + $0x78] sm:$0xff]
  %v1508 = vsel %vm368, %v1490, 0
  %1510 = vmatprep.subr.mxu0 0.0
  %1511 = vmatpush1.msra.mxu0 %v1499
  %1512 = vmatprep.subr.mxu0 0.0
  %1513 = vmatpush1.msra.mxu0 %v1500
  %1514 = vmatprep.subr.mxu0 0.0
  %1515 = vmatpush1.msra.mxu0 %v1501
  %1516 = vmatprep.subr.mxu0 0.0
  %1517 = vmatpush1.msra.mxu0 %v1502
  %1518 = vmatprep.subr.mxu0 0.0
  %1519 = vmatpush1.msra.mxu0 %v1503
  %1520 = vmatprep.subr.mxu0 0.0
  %1521 = vmatpush1.msra.mxu0 %v1504
  %1522 = vmatprep.subr.mxu0 0.0
  %1523 = vmatpush1.msra.mxu0 %v1505
  %1524 = vmatprep.subr.mxu0 0.0
  %1525 = vmatpush1.msra.mxu0 %v1506
  %1526 = vmatprep.subr.mxu0 0.0
  %1527 = vmatpush1.msra.mxu0 0.0
  %1528 = vmatprep.subr.mxu0 0.0
  %1529 = vmatpush1.msra.mxu0 0.0
  %1530 = vmatprep.subr.mxu0 0.0
  %1531 = vmatpush1.msra.mxu0 0.0
  %1532 = vmatprep.subr.mxu0 0.0
  %1533 = vmatpush1.msra.mxu0 0.0
  %1534 = vmatprep.subr.mxu0 0.0
  %1535 = vmatpush1.msra.mxu0 0.0
  %1536 = vmatprep.subr.mxu0 0.0
  %1537 = vmatpush1.msra.mxu0 0.0
  %1538 = vmatprep.subr.mxu0 0.0
  %1539 = vmatpush1.msra.mxu0 0.0
  %1540 = vmatprep.subr.mxu0 0.0
  %1541 = vmatpush1.msra.mxu0 0.0
  %1542 = vmatprep.subr.mxu0 0.0
  %1543 = vmatpush1.msra.mxu0 0.0
  %1544 = vmatprep.subr.mxu0 0.0
  %1545 = vmatpush1.msra.mxu0 0.0
  %1546 = vmatprep.subr.mxu0 0.0
  %1547 = vmatpush1.msra.mxu0 0.0
  %1548 = vmatprep.subr.mxu0 0.0
  %1549 = vmatpush1.msra.mxu0 0.0
  %1550 = vmatprep.subr.mxu0 0.0
  %1551 = vmatpush1.msra.mxu0 0.0
  %1552 = vmatprep.subr.mxu0 0.0
  %1553 = vmatpush1.msra.mxu0 0.0
  %1554 = vmatprep.subr.mxu0 0.0
  %1555 = vmatpush1.msra.mxu0 0.0
  %1556 = vmatprep.subr.mxu0 0.0
  %1557 = vmatpush1.msra.mxu0 0.0
  %1558 = vmatprep.subr.mxu0 0.0
  %1559 = vmatpush1.msra.mxu0 0.0
  %1560 = vmatprep.subr.mxu0 0.0
  %1561 = vmatpush1.msra.mxu0 0.0
  %1562 = vmatprep.subr.mxu0 0.0
  %1563 = vmatpush1.msra.mxu0 0.0
  %1564 = vmatprep.subr.mxu0 0.0
  %1565 = vmatpush1.msra.mxu0 0.0
  %1566 = vmatprep.subr.mxu0 0.0
  %1567 = vmatpush1.msra.mxu0 0.0
  %1568 = vmatprep.subr.mxu0 0.0
  %1569 = vmatpush1.msra.mxu0 0.0
  %1570 = vmatprep.subr.mxu0 0.0
  %1571 = vmatpush1.msra.mxu0 0.0
  %1572 = vmatprep.subr.mxu0 0.0
  %1573 = vmatpush1.msra.mxu0 0.0
  %1574 = vmatprep.mubr.f32.mxu0 0.0
  %1575 = vmatmul.mubr.f32.gmra.mrb[0].mxu0 %v1508
  %v1576 = vpop.f32.mrb[0].mxu0
  %v1577 = vadd.f32 0.0, %v1576
  %v1578 = vpop.f32.mrb[0].mxu0
  %1579 = vdwg.mxu0
  %v1581 = vlaneseq
  %v1582 = vshrl.u32 %v1581, 7
  %v1583 = vsub.s32 0, %v1582
  %v1584 = vrot.slane %v1481, %v1583
  %1585 = vrot.lane.b32.xlu0 %v1584, 64
  %v1586 = vpop.permute.xlu0 %1585
  %v1587 = vsel %vm368, %v1586, 0
  %1589 = vmatprep.subr.mxu0 0.0
  %1590 = vmatpush1.msra.mxu0 %v1491
  %1591 = vmatprep.subr.mxu0 0.0
  %1592 = vmatpush1.msra.mxu0 %v1492
  %1593 = vmatprep.subr.mxu0 0.0
  %1594 = vmatpush1.msra.mxu0 %v1493
  %1595 = vmatprep.subr.mxu0 0.0
  %1596 = vmatpush1.msra.mxu0 %v1494
  %1597 = vmatprep.subr.mxu0 0.0
  %1598 = vmatpush1.msra.mxu0 %v1495
  %1599 = vmatprep.subr.mxu0 0.0
  %1600 = vmatpush1.msra.mxu0 %v1496
  %1601 = vmatprep.subr.mxu0 0.0
  %1602 = vmatpush1.msra.mxu0 %v1497
  %1603 = vmatprep.subr.mxu0 0.0
  %1604 = vmatpush1.msra.mxu0 %v1498
  %1605 = vmatprep.subr.mxu0 0.0
  %1606 = vmatpush1.msra.mxu0 0.0
  %1607 = vmatprep.subr.mxu0 0.0
  %1608 = vmatpush1.msra.mxu0 0.0
  %1609 = vmatprep.subr.mxu0 0.0
  %1610 = vmatpush1.msra.mxu0 0.0
  %1611 = vmatprep.subr.mxu0 0.0
  %1612 = vmatpush1.msra.mxu0 0.0
  %1613 = vmatprep.subr.mxu0 0.0
  %1614 = vmatpush1.msra.mxu0 0.0
  %1615 = vmatprep.subr.mxu0 0.0
  %1616 = vmatpush1.msra.mxu0 0.0
  %1617 = vmatprep.subr.mxu0 0.0
  %1618 = vmatpush1.msra.mxu0 0.0
  %1619 = vmatprep.subr.mxu0 0.0
  %1620 = vmatpush1.msra.mxu0 0.0
  %1621 = vmatprep.subr.mxu0 0.0
  %1622 = vmatpush1.msra.mxu0 0.0
  %1623 = vmatprep.subr.mxu0 0.0
  %1624 = vmatpush1.msra.mxu0 0.0
  %1625 = vmatprep.subr.mxu0 0.0
  %1626 = vmatpush1.msra.mxu0 0.0
  %1627 = vmatprep.subr.mxu0 0.0
  %1628 = vmatpush1.msra.mxu0 0.0
  %1629 = vmatprep.subr.mxu0 0.0
  %1630 = vmatpush1.msra.mxu0 0.0
  %1631 = vmatprep.subr.mxu0 0.0
  %1632 = vmatpush1.msra.mxu0 0.0
  %1633 = vmatprep.subr.mxu0 0.0
  %1634 = vmatpush1.msra.mxu0 0.0
  %1635 = vmatprep.subr.mxu0 0.0
  %1636 = vmatpush1.msra.mxu0 0.0
  %1637 = vmatprep.subr.mxu0 0.0
  %1638 = vmatpush1.msra.mxu0 0.0
  %1639 = vmatprep.subr.mxu0 0.0
  %1640 = vmatpush1.msra.mxu0 0.0
  %1641 = vmatprep.subr.mxu0 0.0
  %1642 = vmatpush1.msra.mxu0 0.0
  %1643 = vmatprep.subr.mxu0 0.0
  %1644 = vmatpush1.msra.mxu0 0.0
  %1645 = vmatprep.subr.mxu0 0.0
  %1646 = vmatpush1.msra.mxu0 0.0
  %1647 = vmatprep.subr.mxu0 0.0
  %1648 = vmatpush1.msra.mxu0 0.0
  %1649 = vmatprep.subr.mxu0 0.0
  %1650 = vmatpush1.msra.mxu0 0.0
  %1651 = vmatprep.subr.mxu0 0.0
  %1652 = vmatpush1.msra.mxu0 0.0
  %1653 = vmatprep.mubr.f32.mxu0 0.0
  %1654 = vmatmul.mubr.f32.gmra.mrb[0].mxu0 %v1587
  %v1655 = vpop.f32.mrb[0].mxu0
  %v1656 = vadd.f32 %v1577, %v1655
  %v1657 = vpop.f32.mrb[0].mxu0
  %1658 = vdwg.mxu0
  %v1659 = vld [vmem:[%s8 + $0x80] sm:$0xff]
  %v1660 = vld [vmem:[%s8 + $0x88] sm:$0xff]
  %v1661 = vld [vmem:[%s8 + $0x90] sm:$0xff]
  %v1662 = vld [vmem:[%s8 + $0x98] sm:$0xff]
  %v1663 = vld [vmem:[%s8 + $0xa0] sm:$0xff]
  %v1664 = vld [vmem:[%s8 + $0xa8] sm:$0xff]
  %v1665 = vld [vmem:[%s8 + $0xb0] sm:$0xff]
  %v1666 = vld [vmem:[%s8 + $0xb8] sm:$0xff]
  %v1668 = vsel %vm368, %v377, 0
  %1670 = vmatprep.subr.mxu0 0.0
  %1671 = vmatpush1.msra.mxu0 %v1659
  %1672 = vmatprep.subr.mxu0 0.0
  %1673 = vmatpush1.msra.mxu0 %v1660
  %1674 = vmatprep.subr.mxu0 0.0
  %1675 = vmatpush1.msra.mxu0 %v1661
  %1676 = vmatprep.subr.mxu0 0.0
  %1677 = vmatpush1.msra.mxu0 %v1662
  %1678 = vmatprep.subr.mxu0 0.0
  %1679 = vmatpush1.msra.mxu0 %v1663
  %1680 = vmatprep.subr.mxu0 0.0
  %1681 = vmatpush1.msra.mxu0 %v1664
  %1682 = vmatprep.subr.mxu0 0.0
  %1683 = vmatpush1.msra.mxu0 %v1665
  %1684 = vmatprep.subr.mxu0 0.0
  %1685 = vmatpush1.msra.mxu0 %v1666
  %1686 = vmatprep.subr.mxu0 0.0
  %1687 = vmatpush1.msra.mxu0 0.0
  %1688 = vmatprep.subr.mxu0 0.0
  %1689 = vmatpush1.msra.mxu0 0.0
  %1690 = vmatprep.subr.mxu0 0.0
  %1691 = vmatpush1.msra.mxu0 0.0
  %1692 = vmatprep.subr.mxu0 0.0
  %1693 = vmatpush1.msra.mxu0 0.0
  %1694 = vmatprep.subr.mxu0 0.0
  %1695 = vmatpush1.msra.mxu0 0.0
  %1696 = vmatprep.subr.mxu0 0.0
  %1697 = vmatpush1.msra.mxu0 0.0
  %1698 = vmatprep.subr.mxu0 0.0
  %1699 = vmatpush1.msra.mxu0 0.0
  %1700 = vmatprep.subr.mxu0 0.0
  %1701 = vmatpush1.msra.mxu0 0.0
  %1702 = vmatprep.subr.mxu0 0.0
  %1703 = vmatpush1.msra.mxu0 0.0
  %1704 = vmatprep.subr.mxu0 0.0
  %1705 = vmatpush1.msra.mxu0 0.0
  %1706 = vmatprep.subr.mxu0 0.0
  %1707 = vmatpush1.msra.mxu0 0.0
  %1708 = vmatprep.subr.mxu0 0.0
  %1709 = vmatpush1.msra.mxu0 0.0
  %1710 = vmatprep.subr.mxu0 0.0
  %1711 = vmatpush1.msra.mxu0 0.0
  %1712 = vmatprep.subr.mxu0 0.0
  %1713 = vmatpush1.msra.mxu0 0.0
  %1714 = vmatprep.subr.mxu0 0.0
  %1715 = vmatpush1.msra.mxu0 0.0
  %1716 = vmatprep.subr.mxu0 0.0
  %1717 = vmatpush1.msra.mxu0 0.0
  %1718 = vmatprep.subr.mxu0 0.0
  %1719 = vmatpush1.msra.mxu0 0.0
  %1720 = vmatprep.subr.mxu0 0.0
  %1721 = vmatpush1.msra.mxu0 0.0
  %1722 = vmatprep.subr.mxu0 0.0
  %1723 = vmatpush1.msra.mxu0 0.0
  %1724 = vmatprep.subr.mxu0 0.0
  %1725 = vmatpush1.msra.mxu0 0.0
  %1726 = vmatprep.subr.mxu0 0.0
  %1727 = vmatpush1.msra.mxu0 0.0
  %1728 = vmatprep.subr.mxu0 0.0
  %1729 = vmatpush1.msra.mxu0 0.0
  %1730 = vmatprep.subr.mxu0 0.0
  %1731 = vmatpush1.msra.mxu0 0.0
  %1732 = vmatprep.subr.mxu0 0.0
  %1733 = vmatpush1.msra.mxu0 0.0
  %1734 = vmatprep.mubr.f32.mxu0 0.0
  %1735 = vmatmul.mubr.f32.gmra.mrb[0].mxu0 %v1668
  %v1736 = vpop.f32.mrb[0].mxu0
  %v1737 = vadd.f32 0.0, %v1736
  %v1738 = vpop.f32.mrb[0].mxu0
  %1739 = vdwg.mxu0
  %v1740 = vadd.f32 %v1656, %v1737
  %vm1741 = vcmask 253952
  %1742 = vst.msk [vmem:[%s9] sm:$0x1] %vm1741, %v1740
  // Predicated region
  $region38: #{net_forward.2} parent=0 // pred_check
    _
  $region39: #{net_forward.2} parent=0 // pred_check_branch
    %1744 = sbr.rel (0) target = $region41
  $region40: #{net_forward.2} parent=0 // pred_region
    _
  $region41: #{net_forward.2} parent=0 // pred_fallthru
    _
  // Predicated region
  $region42: #{net_forward.2} parent=0 // pred_check
    _
  $region43: #{net_forward.2} parent=0 // pred_check_branch
    %1746 = sbr.rel (0) target = $region45
  $region44: #{net_forward.2} parent=0 // pred_region
    _
  $region45: #{net_forward.2} parent=0 // pred_fallthru
    _

</llo_original>
